<compile_context>
chip_gen: v7x
topology: tpu7x:2x2x1
jax: 0.10.0
libtpu: 0.0.40
codegen_flags: <defaults>
</compile_context>

<pallas_src>
import jax
import jax.numpy as jnp
from jax import lax
from jax.experimental import pallas as pl
from jax.experimental.pallas import tpu as pltpu


def _round_up(n, m):
    return ((n + m - 1) // m) * m


def _rnn_kernel(x_ref, w1_ref, b1_ref, wi_ref, bi_ref, wh_ref, bhn_ref,
                w2_ref, b2_ref, wms_ref, bms_ref, h0_ref,
                ms_ref, xout_ref, hn_ref,
                gi_s, hall_s):
    """Single-shot RNN actor forward.

    Shapes (Bp = batch padded to a sublane multiple; rows are time-major flat):
      x_ref : (T*Bp, F)
      w1    : (F, H),  b1 : (1, H)
      wi    : (H, 3H)  packed [W_ir | W_iz | W_in]
      bi    : (1, 3H)  packed [b_ir+b_hr | b_iz+b_hz | b_in]
      wh    : (H, 3H)  packed [W_hr | W_hz | W_hn]
      bhn   : (1, H)
      w2    : (H, H),  b2 : (1, H)
      wms   : (H, 2A)  packed [W_mean | W_std],  bms : (1, 2A)
      h0    : (Bp, H)
    Outputs:
      ms_ref   : (T*Bp, 2A)  packed [mean | log_std(unclipped)]
      xout_ref : (T*Bp, H)   post-f2 features
      hn_ref   : (Bp, H)     final hidden state
    """
    Bp, H = h0_ref.shape
    TB = x_ref.shape[0]
    T = TB // Bp
    H2 = 2 * H

    # ---- f1 + ReLU for the whole sequence (one bulk MXU matmul) ----
    h1 = jnp.maximum(
        jnp.dot(x_ref[...], w1_ref[...], preferred_element_type=jnp.float32)
        + b1_ref[...], 0.0)                                          # (T*Bp, H)

    # ---- packed input-side gate projection for the whole sequence ----
    gi_s[...] = (jnp.dot(h1, wi_ref[...], preferred_element_type=jnp.float32)
                 + bi_ref[...])                                      # (T*Bp, 3H)

    # ---- loop-invariants hoisted out of the serial recurrence ----
    wh = wh_ref[...]                                                 # (H, 3H)
    bhn = jnp.broadcast_to(bhn_ref[...], (Bp, H))                    # broadcast once

    # ---- sequential GRU recurrence (T static & small -> full unroll) ----
    def step(t, h):
        rows = pl.ds(pl.multiple_of(t * Bp, Bp), Bp)   # sublane-tile aligned slab
        gi_t = gi_s[rows, :]                                         # (Bp, 3H)
        gh = jnp.dot(h, wh, preferred_element_type=jnp.float32)      # 1 MXU push/step
        rz = jax.nn.sigmoid(gi_t[:, :H2] + gh[:, :H2])               # 1 EUP slab (r|z)
        r = rz[:, :H]
        z = rz[:, H:]
        n = jnp.tanh(gi_t[:, H2:] + r * (gh[:, H2:] + bhn))
        h_new = (1.0 - z) * n + z * h
        hall_s[rows, :] = h_new
        return h_new

    h_last = lax.fori_loop(0, T, step, h0_ref[...], unroll=True)
    hn_ref[...] = h_last

    # ---- f2 + ReLU and fused mean|log_std head (bulk, lane-dense output slabs) ----
    x2 = jnp.maximum(
        jnp.dot(hall_s[...], w2_ref[...], preferred_element_type=jnp.float32)
        + b2_ref[...], 0.0)
    xout_ref[...] = x2
    ms_ref[...] = (jnp.dot(x2, wms_ref[...], preferred_element_type=jnp.float32)
                   + bms_ref[...])


@jax.jit
def rnn_forward(state, h_prev, packed):
    """state: (B, T, inp_dim), h_prev: (1, B, H), packed: kernel-layout params ->
       (mean (B,T,A), log_std (B,T,A), x (B,T,H), hn (1,B,H))."""
    B, T, F = state.shape
    H = packed["w1"].shape[1]
    A2 = packed["wms"].shape[1]
    A = A2 // 2
    Bp = _round_up(max(B, 8), 8)          # sublane-align per-step row slabs

    # time-major, batch padded, flat 2-D rows (tiny at these sizes; at realistic
    # sizes this transpose moves into a BlockSpec index_map over a T-chunk grid)
    x_tm = jnp.transpose(state, (1, 0, 2))                           # (T, B, F)
    x_tm = jnp.pad(x_tm, ((0, 0), (0, Bp - B), (0, 0))).reshape(T * Bp, F)
    h0 = jnp.pad(h_prev[0], ((0, Bp - B), (0, 0)))                   # (Bp, H)

    vmem = pl.BlockSpec(memory_space=pltpu.MemorySpace.VMEM)
    ms_t, x_t, hn = pl.pallas_call(
        _rnn_kernel,
        out_shape=(
            jax.ShapeDtypeStruct((T * Bp, A2), jnp.float32),         # mean | log_std
            jax.ShapeDtypeStruct((T * Bp, H), jnp.float32),          # rnn features x
            jax.ShapeDtypeStruct((Bp, H), jnp.float32),              # hn
        ),
        in_specs=[vmem] * 12,
        out_specs=(vmem, vmem, vmem),
        scratch_shapes=[
            pltpu.VMEM((T * Bp, 3 * H), jnp.float32),                # packed gi
            pltpu.VMEM((T * Bp, H), jnp.float32),                    # per-step hidden
        ],
    )(x_tm, packed["w1"], packed["b1"], packed["wi"], packed["bi"],
      packed["wh"], packed["bhn"], packed["w2"], packed["b2"],
      packed["wms"], packed["bms"], h0)

    def unpad(y):
        return jnp.transpose(y.reshape(T, Bp, -1)[:, :B], (1, 0, 2))  # (B, T, ·)

    ms = unpad(ms_t)
    mean = ms[..., :A]
    log_std = jnp.clip(ms[..., A:], -20.0, 1.0)
    return mean, log_std, unpad(x_t), hn[:B][None]


def init_params(key, inp_dim, hid_dim, action_dim):
    """Deterministic synthetic params, torch-like per-gate layout (weights (in, out))."""
    H, A, F = hid_dim, action_dim, inp_dim
    ks = jax.random.split(key, 20)

    def xav(k, shape):
        fan_in, fan_out = shape
        std = (2.0 / (fan_in + fan_out)) ** 0.5
        return std * jax.random.normal(k, shape, jnp.float32)

    def bias(k, n):
        return 0.1 * jax.random.normal(k, (1, n), jnp.float32)

    return {
        "w1": xav(ks[0], (F, H)),  "b1": bias(ks[1], H),
        "wir": xav(ks[2], (H, H)), "wiz": xav(ks[3], (H, H)), "win": xav(ks[4], (H, H)),
        "bir": bias(ks[5], H),     "biz": bias(ks[6], H),     "bin": bias(ks[7], H),
        "whr": xav(ks[8], (H, H)), "whz": xav(ks[9], (H, H)), "whn": xav(ks[10], (H, H)),
        "bhr": bias(ks[11], H),    "bhz": bias(ks[12], H),    "bhn": bias(ks[13], H),
        "w2": xav(ks[14], (H, H)), "b2": bias(ks[15], H),
        "wm": xav(ks[16], (H, A)), "bm": bias(ks[17], A),
        "ws": xav(ks[18], (H, A)), "bs": bias(ks[19], A),
    }


def pack_params(p):
    """Pack per-gate params into the kernel layout (done once, outside jit)."""
    return {
        "w1": p["w1"], "b1": p["b1"],
        "wi": jnp.concatenate([p["wir"], p["wiz"], p["win"]], axis=1),
        "bi": jnp.concatenate(
            [p["bir"] + p["bhr"], p["biz"] + p["bhz"], p["bin"]], axis=1),
        "wh": jnp.concatenate([p["whr"], p["whz"], p["whn"]], axis=1),
        "bhn": p["bhn"],
        "w2": p["w2"], "b2": p["b2"],
        "wms": jnp.concatenate([p["wm"], p["ws"]], axis=1),
        "bms": jnp.concatenate([p["bm"], p["bs"]], axis=1),
    }


def rnn_reference(state, h_prev, p):
    """Pure-JAX reference matching torch GRU semantics (for validation)."""
    x1 = jax.nn.relu(state @ p["w1"] + p["b1"][0])                   # (B, T, H)

    def step(h, x_t):
        r = jax.nn.sigmoid(x_t @ p["wir"] + p["bir"][0] + h @ p["whr"] + p["bhr"][0])
        z = jax.nn.sigmoid(x_t @ p["wiz"] + p["biz"][0] + h @ p["whz"] + p["bhz"][0])
        n = jnp.tanh(x_t @ p["win"] + p["bin"][0]
                     + r * (h @ p["whn"] + p["bhn"][0]))
        h_new = (1.0 - z) * n + z * h
        return h_new, h_new

    h_last, hs = lax.scan(step, h_prev[0], jnp.transpose(x1, (1, 0, 2)))
    rnn_out = jnp.transpose(hs, (1, 0, 2))                           # (B, T, H)
    x2 = jax.nn.relu(rnn_out @ p["w2"] + p["b2"][0])
    mean = x2 @ p["wm"] + p["bm"][0]
    log_std = jnp.clip(x2 @ p["ws"] + p["bs"][0], -20.0, 1.0)
    return mean, log_std, x2, h_last[None]


if __name__ == "__main__":
    B, T = 2, 8
    inp_dim, hid_dim, action_dim = 16, 32, 4

    key = jax.random.PRNGKey(0)
    k_s, k_h, k_p = jax.random.split(key, 3)
    state = jax.random.normal(k_s, (B, T, inp_dim), jnp.float32)
    h_prev = jax.random.normal(k_h, (1, B, hid_dim), jnp.float32)
    params = init_params(k_p, inp_dim, hid_dim, action_dim)
    packed = pack_params(params)

    mean, log_std, x, hn = rnn_forward(state, h_prev, packed)
    jax.block_until_ready((mean, log_std, x, hn))

    mean_r, logstd_r, x_r, hn_r = rnn_reference(state, h_prev, params)
    for got, ref, name, shp in [
            (mean, mean_r, "mean", (B, T, action_dim)),
            (log_std, logstd_r, "log_std", (B, T, action_dim)),
            (x, x_r, "x", (B, T, hid_dim)),
            (hn, hn_r, "hn", (1, B, hid_dim))]:
        assert got.shape == shp, (name, got.shape, shp)
        assert jnp.allclose(got, ref, atol=2e-3, rtol=2e-3), (
            name, float(jnp.max(jnp.abs(got - ref))))

    print("KERNEL_OK")
</pallas_src>

<mosaic_0001>
module attributes {stable_mosaic.version = 11 : i64} {
  func.func @_rnn_kernel(%arg0: memref<64x16xf32, #tpu.memory_space<vmem>>, %arg1: memref<16x32xf32, #tpu.memory_space<vmem>>, %arg2: memref<1x32xf32, #tpu.memory_space<vmem>>, %arg3: memref<32x96xf32, #tpu.memory_space<vmem>>, %arg4: memref<1x96xf32, #tpu.memory_space<vmem>>, %arg5: memref<32x96xf32, #tpu.memory_space<vmem>>, %arg6: memref<1x32xf32, #tpu.memory_space<vmem>>, %arg7: memref<32x32xf32, #tpu.memory_space<vmem>>, %arg8: memref<1x32xf32, #tpu.memory_space<vmem>>, %arg9: memref<32x8xf32, #tpu.memory_space<vmem>>, %arg10: memref<1x8xf32, #tpu.memory_space<vmem>>, %arg11: memref<8x32xf32, #tpu.memory_space<vmem>>, %arg12: memref<64x8xf32, #tpu.memory_space<vmem>>, %arg13: memref<64x32xf32, #tpu.memory_space<vmem>>, %arg14: memref<8x32xf32, #tpu.memory_space<vmem>>, %arg15: memref<64x96xf32, #tpu.memory_space<vmem>>, %arg16: memref<64x32xf32, #tpu.memory_space<vmem>>) attributes {dimension_semantics = [], scalar_prefetch = 0 : i64, scratch_operands = 2 : i64, tpu.core_type = #tpu.core_type<tc>} {
    %c0 = arith.constant 0 : index
    %c0_0 = arith.constant 0 : index
    %0 = vector.load %arg0[%c0, %c0_0] : memref<64x16xf32, #tpu.memory_space<vmem>>, vector<64x16xf32>
    %c0_1 = arith.constant 0 : index
    %c0_2 = arith.constant 0 : index
    %1 = vector.load %arg1[%c0_1, %c0_2] : memref<16x32xf32, #tpu.memory_space<vmem>>, vector<16x32xf32>
    %cst = arith.constant dense<0.000000e+00> : vector<64x32xf32>
    %2 = tpu.matmul %0, %1, %cst {dimension_numbers = #tpu.dot_dimension_numbers<[1], [0], [0], [1], [0, 0, 1, 1], [], []>} : vector<64x16xf32>, vector<16x32xf32>, vector<64x32xf32> -> vector<64x32xf32>
    %c0_3 = arith.constant 0 : index
    %c0_4 = arith.constant 0 : index
    %3 = vector.load %arg2[%c0_3, %c0_4] : memref<1x32xf32, #tpu.memory_space<vmem>>, vector<1x32xf32>
    %4 = vector.broadcast %3 : vector<1x32xf32> to vector<64x32xf32>
    %5 = arith.addf %2, %4 : vector<64x32xf32>
    %cst_5 = arith.constant 0.000000e+00 : f32
    %6 = vector.broadcast %cst_5 : f32 to vector<64x32xf32>
    %7 = arith.maximumf %5, %6 : vector<64x32xf32>
    %c0_6 = arith.constant 0 : index
    %c0_7 = arith.constant 0 : index
    %8 = vector.load %arg3[%c0_6, %c0_7] : memref<32x96xf32, #tpu.memory_space<vmem>>, vector<32x96xf32>
    %cst_8 = arith.constant dense<0.000000e+00> : vector<64x96xf32>
    %9 = tpu.matmul %7, %8, %cst_8 {dimension_numbers = #tpu.dot_dimension_numbers<[1], [0], [0], [1], [0, 0, 1, 1], [], []>} : vector<64x32xf32>, vector<32x96xf32>, vector<64x96xf32> -> vector<64x96xf32>
    %c0_9 = arith.constant 0 : index
    %c0_10 = arith.constant 0 : index
    %10 = vector.load %arg4[%c0_9, %c0_10] : memref<1x96xf32, #tpu.memory_space<vmem>>, vector<1x96xf32>
    %11 = vector.broadcast %10 : vector<1x96xf32> to vector<64x96xf32>
    %12 = arith.addf %9, %11 : vector<64x96xf32>
    %c0_11 = arith.constant 0 : index
    %c0_12 = arith.constant 0 : index
    %13 = vector.load %arg15[%c0_11, %c0_12] : memref<64x96xf32, #tpu.memory_space<vmem>>, vector<64x96xf32>
    tpu.vector_store %arg15[%c0_11, %c0_12], %12 {strides = array<i32>} : memref<64x96xf32, #tpu.memory_space<vmem>>, vector<64x96xf32>,
    %c0_13 = arith.constant 0 : index
    %c0_14 = arith.constant 0 : index
    %14 = vector.load %arg5[%c0_13, %c0_14] : memref<32x96xf32, #tpu.memory_space<vmem>>, vector<32x96xf32>
    %c0_15 = arith.constant 0 : index
    %c0_16 = arith.constant 0 : index
    %15 = vector.load %arg6[%c0_15, %c0_16] : memref<1x32xf32, #tpu.memory_space<vmem>>, vector<1x32xf32>
    %16 = vector.shape_cast %15 : vector<1x32xf32> to vector<1x32xf32>
    %17 = vector.broadcast %16 : vector<1x32xf32> to vector<8x32xf32>
    %c0_17 = arith.constant 0 : index
    %c0_18 = arith.constant 0 : index
    %18 = vector.load %arg11[%c0_17, %c0_18] : memref<8x32xf32, #tpu.memory_space<vmem>>, vector<8x32xf32>
    %c0_i32 = arith.constant 0 : i32
    %c8_i32 = arith.constant 8 : i32
    %19 = arith.muli %c0_i32, %c8_i32 : i32
    %20 = tpu.assume_multiple %19, 8 : i32
    %21 = arith.index_cast %20 : i32 to index
    %c0_19 = arith.constant 0 : index
    %22 = vector.load %arg15[%21, %c0_19] : memref<64x96xf32, #tpu.memory_space<vmem>>, vector<8x96xf32>
    %cst_20 = arith.constant dense<0.000000e+00> : vector<8x96xf32>
    %23 = tpu.matmul %18, %14, %cst_20 {dimension_numbers = #tpu.dot_dimension_numbers<[1], [0], [0], [1], [0, 0, 1, 1], [], []>} : vector<8x32xf32>, vector<32x96xf32>, vector<8x96xf32> -> vector<8x96xf32>
    %24 = vector.extract_strided_slice %22 {offsets = [0, 0], sizes = [8, 64], strides = [1, 1]} : vector<8x96xf32> to vector<8x64xf32>
    %25 = vector.extract_strided_slice %23 {offsets = [0, 0], sizes = [8, 64], strides = [1, 1]} : vector<8x96xf32> to vector<8x64xf32>
    %26 = arith.addf %24, %25 : vector<8x64xf32>
    %27 = arith.negf %26 : vector<8x64xf32>
    %28 = math.exp %27 : vector<8x64xf32>
    %cst_21 = arith.constant 1.000000e+00 : f32
    %29 = vector.broadcast %cst_21 : f32 to vector<8x64xf32>
    %30 = arith.addf %29, %28 : vector<8x64xf32>
    %31 = arith.divf %29, %30 : vector<8x64xf32>
    %32 = vector.extract_strided_slice %31 {offsets = [0, 0], sizes = [8, 32], strides = [1, 1]} : vector<8x64xf32> to vector<8x32xf32>
    %33 = vector.extract_strided_slice %31 {offsets = [0, 32], sizes = [8, 32], strides = [1, 1]} : vector<8x64xf32> to vector<8x32xf32>
    %34 = vector.extract_strided_slice %22 {offsets = [0, 64], sizes = [8, 32], strides = [1, 1]} : vector<8x96xf32> to vector<8x32xf32>
    %35 = vector.extract_strided_slice %23 {offsets = [0, 64], sizes = [8, 32], strides = [1, 1]} : vector<8x96xf32> to vector<8x32xf32>
    %36 = arith.addf %35, %17 : vector<8x32xf32>
    %37 = arith.mulf %32, %36 : vector<8x32xf32>
    %38 = arith.addf %34, %37 : vector<8x32xf32>
    %39 = math.tanh %38 : vector<8x32xf32>
    %cst_22 = arith.constant 1.000000e+00 : f32
    %40 = vector.broadcast %cst_22 : f32 to vector<8x32xf32>
    %41 = arith.subf %40, %33 : vector<8x32xf32>
    %42 = arith.mulf %41, %39 : vector<8x32xf32>
    %43 = arith.mulf %33, %18 : vector<8x32xf32>
    %44 = arith.addf %42, %43 : vector<8x32xf32>
    %45 = arith.index_cast %20 : i32 to index
    %c0_23 = arith.constant 0 : index
    %46 = vector.load %arg16[%45, %c0_23] : memref<64x32xf32, #tpu.memory_space<vmem>>, vector<8x32xf32>
    tpu.vector_store %arg16[%45, %c0_23], %44 {strides = array<i32>} : memref<64x32xf32, #tpu.memory_space<vmem>>, vector<8x32xf32>,
    %c1_i32 = arith.constant 1 : i32
    %c8_i32_24 = arith.constant 8 : i32
    %47 = arith.muli %c1_i32, %c8_i32_24 : i32
    %48 = tpu.assume_multiple %47, 8 : i32
    %49 = arith.index_cast %48 : i32 to index
    %c0_25 = arith.constant 0 : index
    %50 = vector.load %arg15[%49, %c0_25] : memref<64x96xf32, #tpu.memory_space<vmem>>, vector<8x96xf32>
    %cst_26 = arith.constant dense<0.000000e+00> : vector<8x96xf32>
    %51 = tpu.matmul %44, %14, %cst_26 {dimension_numbers = #tpu.dot_dimension_numbers<[1], [0], [0], [1], [0, 0, 1, 1], [], []>} : vector<8x32xf32>, vector<32x96xf32>, vector<8x96xf32> -> vector<8x96xf32>
    %52 = vector.extract_strided_slice %50 {offsets = [0, 0], sizes = [8, 64], strides = [1, 1]} : vector<8x96xf32> to vector<8x64xf32>
    %53 = vector.extract_strided_slice %51 {offsets = [0, 0], sizes = [8, 64], strides = [1, 1]} : vector<8x96xf32> to vector<8x64xf32>
    %54 = arith.addf %52, %53 : vector<8x64xf32>
    %55 = arith.negf %54 : vector<8x64xf32>
    %56 = math.exp %55 : vector<8x64xf32>
    %cst_27 = arith.constant 1.000000e+00 : f32
    %57 = vector.broadcast %cst_27 : f32 to vector<8x64xf32>
    %58 = arith.addf %57, %56 : vector<8x64xf32>
    %59 = arith.divf %57, %58 : vector<8x64xf32>
    %60 = vector.extract_strided_slice %59 {offsets = [0, 0], sizes = [8, 32], strides = [1, 1]} : vector<8x64xf32> to vector<8x32xf32>
    %61 = vector.extract_strided_slice %59 {offsets = [0, 32], sizes = [8, 32], strides = [1, 1]} : vector<8x64xf32> to vector<8x32xf32>
    %62 = vector.extract_strided_slice %50 {offsets = [0, 64], sizes = [8, 32], strides = [1, 1]} : vector<8x96xf32> to vector<8x32xf32>
    %63 = vector.extract_strided_slice %51 {offsets = [0, 64], sizes = [8, 32], strides = [1, 1]} : vector<8x96xf32> to vector<8x32xf32>
    %64 = arith.addf %63, %17 : vector<8x32xf32>
    %65 = arith.mulf %60, %64 : vector<8x32xf32>
    %66 = arith.addf %62, %65 : vector<8x32xf32>
    %67 = math.tanh %66 : vector<8x32xf32>
    %cst_28 = arith.constant 1.000000e+00 : f32
    %68 = vector.broadcast %cst_28 : f32 to vector<8x32xf32>
    %69 = arith.subf %68, %61 : vector<8x32xf32>
    %70 = arith.mulf %69, %67 : vector<8x32xf32>
    %71 = arith.mulf %61, %44 : vector<8x32xf32>
    %72 = arith.addf %70, %71 : vector<8x32xf32>
    %73 = arith.index_cast %48 : i32 to index
    %c0_29 = arith.constant 0 : index
    %74 = vector.load %arg16[%73, %c0_29] : memref<64x32xf32, #tpu.memory_space<vmem>>, vector<8x32xf32>
    tpu.vector_store %arg16[%73, %c0_29], %72 {strides = array<i32>} : memref<64x32xf32, #tpu.memory_space<vmem>>, vector<8x32xf32>,
    %c2_i32 = arith.constant 2 : i32
    %c8_i32_30 = arith.constant 8 : i32
    %75 = arith.muli %c2_i32, %c8_i32_30 : i32
    %76 = tpu.assume_multiple %75, 8 : i32
    %77 = arith.index_cast %76 : i32 to index
    %c0_31 = arith.constant 0 : index
    %78 = vector.load %arg15[%77, %c0_31] : memref<64x96xf32, #tpu.memory_space<vmem>>, vector<8x96xf32>
    %cst_32 = arith.constant dense<0.000000e+00> : vector<8x96xf32>
    %79 = tpu.matmul %72, %14, %cst_32 {dimension_numbers = #tpu.dot_dimension_numbers<[1], [0], [0], [1], [0, 0, 1, 1], [], []>} : vector<8x32xf32>, vector<32x96xf32>, vector<8x96xf32> -> vector<8x96xf32>
    %80 = vector.extract_strided_slice %78 {offsets = [0, 0], sizes = [8, 64], strides = [1, 1]} : vector<8x96xf32> to vector<8x64xf32>
    %81 = vector.extract_strided_slice %79 {offsets = [0, 0], sizes = [8, 64], strides = [1, 1]} : vector<8x96xf32> to vector<8x64xf32>
    %82 = arith.addf %80, %81 : vector<8x64xf32>
    %83 = arith.negf %82 : vector<8x64xf32>
    %84 = math.exp %83 : vector<8x64xf32>
    %cst_33 = arith.constant 1.000000e+00 : f32
    %85 = vector.broadcast %cst_33 : f32 to vector<8x64xf32>
    %86 = arith.addf %85, %84 : vector<8x64xf32>
    %87 = arith.divf %85, %86 : vector<8x64xf32>
    %88 = vector.extract_strided_slice %87 {offsets = [0, 0], sizes = [8, 32], strides = [1, 1]} : vector<8x64xf32> to vector<8x32xf32>
    %89 = vector.extract_strided_slice %87 {offsets = [0, 32], sizes = [8, 32], strides = [1, 1]} : vector<8x64xf32> to vector<8x32xf32>
    %90 = vector.extract_strided_slice %78 {offsets = [0, 64], sizes = [8, 32], strides = [1, 1]} : vector<8x96xf32> to vector<8x32xf32>
    %91 = vector.extract_strided_slice %79 {offsets = [0, 64], sizes = [8, 32], strides = [1, 1]} : vector<8x96xf32> to vector<8x32xf32>
    %92 = arith.addf %91, %17 : vector<8x32xf32>
    %93 = arith.mulf %88, %92 : vector<8x32xf32>
    %94 = arith.addf %90, %93 : vector<8x32xf32>
    %95 = math.tanh %94 : vector<8x32xf32>
    %cst_34 = arith.constant 1.000000e+00 : f32
    %96 = vector.broadcast %cst_34 : f32 to vector<8x32xf32>
    %97 = arith.subf %96, %89 : vector<8x32xf32>
    %98 = arith.mulf %97, %95 : vector<8x32xf32>
    %99 = arith.mulf %89, %72 : vector<8x32xf32>
    %100 = arith.addf %98, %99 : vector<8x32xf32>
    %101 = arith.index_cast %76 : i32 to index
    %c0_35 = arith.constant 0 : index
    %102 = vector.load %arg16[%101, %c0_35] : memref<64x32xf32, #tpu.memory_space<vmem>>, vector<8x32xf32>
    tpu.vector_store %arg16[%101, %c0_35], %100 {strides = array<i32>} : memref<64x32xf32, #tpu.memory_space<vmem>>, vector<8x32xf32>,
    %c3_i32 = arith.constant 3 : i32
    %c8_i32_36 = arith.constant 8 : i32
    %103 = arith.muli %c3_i32, %c8_i32_36 : i32
    %104 = tpu.assume_multiple %103, 8 : i32
    %105 = arith.index_cast %104 : i32 to index
    %c0_37 = arith.constant 0 : index
    %106 = vector.load %arg15[%105, %c0_37] : memref<64x96xf32, #tpu.memory_space<vmem>>, vector<8x96xf32>
    %cst_38 = arith.constant dense<0.000000e+00> : vector<8x96xf32>
    %107 = tpu.matmul %100, %14, %cst_38 {dimension_numbers = #tpu.dot_dimension_numbers<[1], [0], [0], [1], [0, 0, 1, 1], [], []>} : vector<8x32xf32>, vector<32x96xf32>, vector<8x96xf32> -> vector<8x96xf32>
    %108 = vector.extract_strided_slice %106 {offsets = [0, 0], sizes = [8, 64], strides = [1, 1]} : vector<8x96xf32> to vector<8x64xf32>
    %109 = vector.extract_strided_slice %107 {offsets = [0, 0], sizes = [8, 64], strides = [1, 1]} : vector<8x96xf32> to vector<8x64xf32>
    %110 = arith.addf %108, %109 : vector<8x64xf32>
    %111 = arith.negf %110 : vector<8x64xf32>
    %112 = math.exp %111 : vector<8x64xf32>
    %cst_39 = arith.constant 1.000000e+00 : f32
    %113 = vector.broadcast %cst_39 : f32 to vector<8x64xf32>
    %114 = arith.addf %113, %112 : vector<8x64xf32>
    %115 = arith.divf %113, %114 : vector<8x64xf32>
    %116 = vector.extract_strided_slice %115 {offsets = [0, 0], sizes = [8, 32], strides = [1, 1]} : vector<8x64xf32> to vector<8x32xf32>
    %117 = vector.extract_strided_slice %115 {offsets = [0, 32], sizes = [8, 32], strides = [1, 1]} : vector<8x64xf32> to vector<8x32xf32>
    %118 = vector.extract_strided_slice %106 {offsets = [0, 64], sizes = [8, 32], strides = [1, 1]} : vector<8x96xf32> to vector<8x32xf32>
    %119 = vector.extract_strided_slice %107 {offsets = [0, 64], sizes = [8, 32], strides = [1, 1]} : vector<8x96xf32> to vector<8x32xf32>
    %120 = arith.addf %119, %17 : vector<8x32xf32>
    %121 = arith.mulf %116, %120 : vector<8x32xf32>
    %122 = arith.addf %118, %121 : vector<8x32xf32>
    %123 = math.tanh %122 : vector<8x32xf32>
    %cst_40 = arith.constant 1.000000e+00 : f32
    %124 = vector.broadcast %cst_40 : f32 to vector<8x32xf32>
    %125 = arith.subf %124, %117 : vector<8x32xf32>
    %126 = arith.mulf %125, %123 : vector<8x32xf32>
    %127 = arith.mulf %117, %100 : vector<8x32xf32>
    %128 = arith.addf %126, %127 : vector<8x32xf32>
    %129 = arith.index_cast %104 : i32 to index
    %c0_41 = arith.constant 0 : index
    %130 = vector.load %arg16[%129, %c0_41] : memref<64x32xf32, #tpu.memory_space<vmem>>, vector<8x32xf32>
    tpu.vector_store %arg16[%129, %c0_41], %128 {strides = array<i32>} : memref<64x32xf32, #tpu.memory_space<vmem>>, vector<8x32xf32>,
    %c4_i32 = arith.constant 4 : i32
    %c8_i32_42 = arith.constant 8 : i32
    %131 = arith.muli %c4_i32, %c8_i32_42 : i32
    %132 = tpu.assume_multiple %131, 8 : i32
    %133 = arith.index_cast %132 : i32 to index
    %c0_43 = arith.constant 0 : index
    %134 = vector.load %arg15[%133, %c0_43] : memref<64x96xf32, #tpu.memory_space<vmem>>, vector<8x96xf32>
    %cst_44 = arith.constant dense<0.000000e+00> : vector<8x96xf32>
    %135 = tpu.matmul %128, %14, %cst_44 {dimension_numbers = #tpu.dot_dimension_numbers<[1], [0], [0], [1], [0, 0, 1, 1], [], []>} : vector<8x32xf32>, vector<32x96xf32>, vector<8x96xf32> -> vector<8x96xf32>
    %136 = vector.extract_strided_slice %134 {offsets = [0, 0], sizes = [8, 64], strides = [1, 1]} : vector<8x96xf32> to vector<8x64xf32>
    %137 = vector.extract_strided_slice %135 {offsets = [0, 0], sizes = [8, 64], strides = [1, 1]} : vector<8x96xf32> to vector<8x64xf32>
    %138 = arith.addf %136, %137 : vector<8x64xf32>
    %139 = arith.negf %138 : vector<8x64xf32>
    %140 = math.exp %139 : vector<8x64xf32>
    %cst_45 = arith.constant 1.000000e+00 : f32
    %141 = vector.broadcast %cst_45 : f32 to vector<8x64xf32>
    %142 = arith.addf %141, %140 : vector<8x64xf32>
    %143 = arith.divf %141, %142 : vector<8x64xf32>
    %144 = vector.extract_strided_slice %143 {offsets = [0, 0], sizes = [8, 32], strides = [1, 1]} : vector<8x64xf32> to vector<8x32xf32>
    %145 = vector.extract_strided_slice %143 {offsets = [0, 32], sizes = [8, 32], strides = [1, 1]} : vector<8x64xf32> to vector<8x32xf32>
    %146 = vector.extract_strided_slice %134 {offsets = [0, 64], sizes = [8, 32], strides = [1, 1]} : vector<8x96xf32> to vector<8x32xf32>
    %147 = vector.extract_strided_slice %135 {offsets = [0, 64], sizes = [8, 32], strides = [1, 1]} : vector<8x96xf32> to vector<8x32xf32>
    %148 = arith.addf %147, %17 : vector<8x32xf32>
    %149 = arith.mulf %144, %148 : vector<8x32xf32>
    %150 = arith.addf %146, %149 : vector<8x32xf32>
    %151 = math.tanh %150 : vector<8x32xf32>
    %cst_46 = arith.constant 1.000000e+00 : f32
    %152 = vector.broadcast %cst_46 : f32 to vector<8x32xf32>
    %153 = arith.subf %152, %145 : vector<8x32xf32>
    %154 = arith.mulf %153, %151 : vector<8x32xf32>
    %155 = arith.mulf %145, %128 : vector<8x32xf32>
    %156 = arith.addf %154, %155 : vector<8x32xf32>
    %157 = arith.index_cast %132 : i32 to index
    %c0_47 = arith.constant 0 : index
    %158 = vector.load %arg16[%157, %c0_47] : memref<64x32xf32, #tpu.memory_space<vmem>>, vector<8x32xf32>
    tpu.vector_store %arg16[%157, %c0_47], %156 {strides = array<i32>} : memref<64x32xf32, #tpu.memory_space<vmem>>, vector<8x32xf32>,
    %c5_i32 = arith.constant 5 : i32
    %c8_i32_48 = arith.constant 8 : i32
    %159 = arith.muli %c5_i32, %c8_i32_48 : i32
    %160 = tpu.assume_multiple %159, 8 : i32
    %161 = arith.index_cast %160 : i32 to index
    %c0_49 = arith.constant 0 : index
    %162 = vector.load %arg15[%161, %c0_49] : memref<64x96xf32, #tpu.memory_space<vmem>>, vector<8x96xf32>
    %cst_50 = arith.constant dense<0.000000e+00> : vector<8x96xf32>
    %163 = tpu.matmul %156, %14, %cst_50 {dimension_numbers = #tpu.dot_dimension_numbers<[1], [0], [0], [1], [0, 0, 1, 1], [], []>} : vector<8x32xf32>, vector<32x96xf32>, vector<8x96xf32> -> vector<8x96xf32>
    %164 = vector.extract_strided_slice %162 {offsets = [0, 0], sizes = [8, 64], strides = [1, 1]} : vector<8x96xf32> to vector<8x64xf32>
    %165 = vector.extract_strided_slice %163 {offsets = [0, 0], sizes = [8, 64], strides = [1, 1]} : vector<8x96xf32> to vector<8x64xf32>
    %166 = arith.addf %164, %165 : vector<8x64xf32>
    %167 = arith.negf %166 : vector<8x64xf32>
    %168 = math.exp %167 : vector<8x64xf32>
    %cst_51 = arith.constant 1.000000e+00 : f32
    %169 = vector.broadcast %cst_51 : f32 to vector<8x64xf32>
    %170 = arith.addf %169, %168 : vector<8x64xf32>
    %171 = arith.divf %169, %170 : vector<8x64xf32>
    %172 = vector.extract_strided_slice %171 {offsets = [0, 0], sizes = [8, 32], strides = [1, 1]} : vector<8x64xf32> to vector<8x32xf32>
    %173 = vector.extract_strided_slice %171 {offsets = [0, 32], sizes = [8, 32], strides = [1, 1]} : vector<8x64xf32> to vector<8x32xf32>
    %174 = vector.extract_strided_slice %162 {offsets = [0, 64], sizes = [8, 32], strides = [1, 1]} : vector<8x96xf32> to vector<8x32xf32>
    %175 = vector.extract_strided_slice %163 {offsets = [0, 64], sizes = [8, 32], strides = [1, 1]} : vector<8x96xf32> to vector<8x32xf32>
    %176 = arith.addf %175, %17 : vector<8x32xf32>
    %177 = arith.mulf %172, %176 : vector<8x32xf32>
    %178 = arith.addf %174, %177 : vector<8x32xf32>
    %179 = math.tanh %178 : vector<8x32xf32>
    %cst_52 = arith.constant 1.000000e+00 : f32
    %180 = vector.broadcast %cst_52 : f32 to vector<8x32xf32>
    %181 = arith.subf %180, %173 : vector<8x32xf32>
    %182 = arith.mulf %181, %179 : vector<8x32xf32>
    %183 = arith.mulf %173, %156 : vector<8x32xf32>
    %184 = arith.addf %182, %183 : vector<8x32xf32>
    %185 = arith.index_cast %160 : i32 to index
    %c0_53 = arith.constant 0 : index
    %186 = vector.load %arg16[%185, %c0_53] : memref<64x32xf32, #tpu.memory_space<vmem>>, vector<8x32xf32>
    tpu.vector_store %arg16[%185, %c0_53], %184 {strides = array<i32>} : memref<64x32xf32, #tpu.memory_space<vmem>>, vector<8x32xf32>,
    %c6_i32 = arith.constant 6 : i32
    %c8_i32_54 = arith.constant 8 : i32
    %187 = arith.muli %c6_i32, %c8_i32_54 : i32
    %188 = tpu.assume_multiple %187, 8 : i32
    %189 = arith.index_cast %188 : i32 to index
    %c0_55 = arith.constant 0 : index
    %190 = vector.load %arg15[%189, %c0_55] : memref<64x96xf32, #tpu.memory_space<vmem>>, vector<8x96xf32>
    %cst_56 = arith.constant dense<0.000000e+00> : vector<8x96xf32>
    %191 = tpu.matmul %184, %14, %cst_56 {dimension_numbers = #tpu.dot_dimension_numbers<[1], [0], [0], [1], [0, 0, 1, 1], [], []>} : vector<8x32xf32>, vector<32x96xf32>, vector<8x96xf32> -> vector<8x96xf32>
    %192 = vector.extract_strided_slice %190 {offsets = [0, 0], sizes = [8, 64], strides = [1, 1]} : vector<8x96xf32> to vector<8x64xf32>
    %193 = vector.extract_strided_slice %191 {offsets = [0, 0], sizes = [8, 64], strides = [1, 1]} : vector<8x96xf32> to vector<8x64xf32>
    %194 = arith.addf %192, %193 : vector<8x64xf32>
    %195 = arith.negf %194 : vector<8x64xf32>
    %196 = math.exp %195 : vector<8x64xf32>
    %cst_57 = arith.constant 1.000000e+00 : f32
    %197 = vector.broadcast %cst_57 : f32 to vector<8x64xf32>
    %198 = arith.addf %197, %196 : vector<8x64xf32>
    %199 = arith.divf %197, %198 : vector<8x64xf32>
    %200 = vector.extract_strided_slice %199 {offsets = [0, 0], sizes = [8, 32], strides = [1, 1]} : vector<8x64xf32> to vector<8x32xf32>
    %201 = vector.extract_strided_slice %199 {offsets = [0, 32], sizes = [8, 32], strides = [1, 1]} : vector<8x64xf32> to vector<8x32xf32>
    %202 = vector.extract_strided_slice %190 {offsets = [0, 64], sizes = [8, 32], strides = [1, 1]} : vector<8x96xf32> to vector<8x32xf32>
    %203 = vector.extract_strided_slice %191 {offsets = [0, 64], sizes = [8, 32], strides = [1, 1]} : vector<8x96xf32> to vector<8x32xf32>
    %204 = arith.addf %203, %17 : vector<8x32xf32>
    %205 = arith.mulf %200, %204 : vector<8x32xf32>
    %206 = arith.addf %202, %205 : vector<8x32xf32>
    %207 = math.tanh %206 : vector<8x32xf32>
    %cst_58 = arith.constant 1.000000e+00 : f32
    %208 = vector.broadcast %cst_58 : f32 to vector<8x32xf32>
    %209 = arith.subf %208, %201 : vector<8x32xf32>
    %210 = arith.mulf %209, %207 : vector<8x32xf32>
    %211 = arith.mulf %201, %184 : vector<8x32xf32>
    %212 = arith.addf %210, %211 : vector<8x32xf32>
    %213 = arith.index_cast %188 : i32 to index
    %c0_59 = arith.constant 0 : index
    %214 = vector.load %arg16[%213, %c0_59] : memref<64x32xf32, #tpu.memory_space<vmem>>, vector<8x32xf32>
    tpu.vector_store %arg16[%213, %c0_59], %212 {strides = array<i32>} : memref<64x32xf32, #tpu.memory_space<vmem>>, vector<8x32xf32>,
    %c7_i32 = arith.constant 7 : i32
    %c8_i32_60 = arith.constant 8 : i32
    %215 = arith.muli %c7_i32, %c8_i32_60 : i32
    %216 = tpu.assume_multiple %215, 8 : i32
    %217 = arith.index_cast %216 : i32 to index
    %c0_61 = arith.constant 0 : index
    %218 = vector.load %arg15[%217, %c0_61] : memref<64x96xf32, #tpu.memory_space<vmem>>, vector<8x96xf32>
    %cst_62 = arith.constant dense<0.000000e+00> : vector<8x96xf32>
    %219 = tpu.matmul %212, %14, %cst_62 {dimension_numbers = #tpu.dot_dimension_numbers<[1], [0], [0], [1], [0, 0, 1, 1], [], []>} : vector<8x32xf32>, vector<32x96xf32>, vector<8x96xf32> -> vector<8x96xf32>
    %220 = vector.extract_strided_slice %218 {offsets = [0, 0], sizes = [8, 64], strides = [1, 1]} : vector<8x96xf32> to vector<8x64xf32>
    %221 = vector.extract_strided_slice %219 {offsets = [0, 0], sizes = [8, 64], strides = [1, 1]} : vector<8x96xf32> to vector<8x64xf32>
    %222 = arith.addf %220, %221 : vector<8x64xf32>
    %223 = arith.negf %222 : vector<8x64xf32>
    %224 = math.exp %223 : vector<8x64xf32>
    %cst_63 = arith.constant 1.000000e+00 : f32
    %225 = vector.broadcast %cst_63 : f32 to vector<8x64xf32>
    %226 = arith.addf %225, %224 : vector<8x64xf32>
    %227 = arith.divf %225, %226 : vector<8x64xf32>
    %228 = vector.extract_strided_slice %227 {offsets = [0, 0], sizes = [8, 32], strides = [1, 1]} : vector<8x64xf32> to vector<8x32xf32>
    %229 = vector.extract_strided_slice %227 {offsets = [0, 32], sizes = [8, 32], strides = [1, 1]} : vector<8x64xf32> to vector<8x32xf32>
    %230 = vector.extract_strided_slice %218 {offsets = [0, 64], sizes = [8, 32], strides = [1, 1]} : vector<8x96xf32> to vector<8x32xf32>
    %231 = vector.extract_strided_slice %219 {offsets = [0, 64], sizes = [8, 32], strides = [1, 1]} : vector<8x96xf32> to vector<8x32xf32>
    %232 = arith.addf %231, %17 : vector<8x32xf32>
    %233 = arith.mulf %228, %232 : vector<8x32xf32>
    %234 = arith.addf %230, %233 : vector<8x32xf32>
    %235 = math.tanh %234 : vector<8x32xf32>
    %cst_64 = arith.constant 1.000000e+00 : f32
    %236 = vector.broadcast %cst_64 : f32 to vector<8x32xf32>
    %237 = arith.subf %236, %229 : vector<8x32xf32>
    %238 = arith.mulf %237, %235 : vector<8x32xf32>
    %239 = arith.mulf %229, %212 : vector<8x32xf32>
    %240 = arith.addf %238, %239 : vector<8x32xf32>
    %241 = arith.index_cast %216 : i32 to index
    %c0_65 = arith.constant 0 : index
    %242 = vector.load %arg16[%241, %c0_65] : memref<64x32xf32, #tpu.memory_space<vmem>>, vector<8x32xf32>
    tpu.vector_store %arg16[%241, %c0_65], %240 {strides = array<i32>} : memref<64x32xf32, #tpu.memory_space<vmem>>, vector<8x32xf32>,
    %c8_i32_66 = arith.constant 8 : i32
    %c0_67 = arith.constant 0 : index
    %c0_68 = arith.constant 0 : index
    %243 = vector.load %arg14[%c0_67, %c0_68] : memref<8x32xf32, #tpu.memory_space<vmem>>, vector<8x32xf32>
    tpu.vector_store %arg14[%c0_67, %c0_68], %240 {strides = array<i32>} : memref<8x32xf32, #tpu.memory_space<vmem>>, vector<8x32xf32>,
    %c0_69 = arith.constant 0 : index
    %c0_70 = arith.constant 0 : index
    %244 = vector.load %arg16[%c0_69, %c0_70] : memref<64x32xf32, #tpu.memory_space<vmem>>, vector<64x32xf32>
    %c0_71 = arith.constant 0 : index
    %c0_72 = arith.constant 0 : index
    %245 = vector.load %arg7[%c0_71, %c0_72] : memref<32x32xf32, #tpu.memory_space<vmem>>, vector<32x32xf32>
    %cst_73 = arith.constant dense<0.000000e+00> : vector<64x32xf32>
    %246 = tpu.matmul %244, %245, %cst_73 {dimension_numbers = #tpu.dot_dimension_numbers<[1], [0], [0], [1], [0, 0, 1, 1], [], []>} : vector<64x32xf32>, vector<32x32xf32>, vector<64x32xf32> -> vector<64x32xf32>
    %c0_74 = arith.constant 0 : index
    %c0_75 = arith.constant 0 : index
    %247 = vector.load %arg8[%c0_74, %c0_75] : memref<1x32xf32, #tpu.memory_space<vmem>>, vector<1x32xf32>
    %248 = vector.broadcast %247 : vector<1x32xf32> to vector<64x32xf32>
    %249 = arith.addf %246, %248 : vector<64x32xf32>
    %cst_76 = arith.constant 0.000000e+00 : f32
    %250 = vector.broadcast %cst_76 : f32 to vector<64x32xf32>
    %251 = arith.maximumf %249, %250 : vector<64x32xf32>
    %c0_77 = arith.constant 0 : index
    %c0_78 = arith.constant 0 : index
    %252 = vector.load %arg13[%c0_77, %c0_78] : memref<64x32xf32, #tpu.memory_space<vmem>>, vector<64x32xf32>
    tpu.vector_store %arg13[%c0_77, %c0_78], %251 {strides = array<i32>} : memref<64x32xf32, #tpu.memory_space<vmem>>, vector<64x32xf32>,
    %c0_79 = arith.constant 0 : index
    %c0_80 = arith.constant 0 : index
    %253 = vector.load %arg9[%c0_79, %c0_80] : memref<32x8xf32, #tpu.memory_space<vmem>>, vector<32x8xf32>
    %cst_81 = arith.constant dense<0.000000e+00> : vector<64x8xf32>
    %254 = tpu.matmul %251, %253, %cst_81 {dimension_numbers = #tpu.dot_dimension_numbers<[1], [0], [0], [1], [0, 0, 1, 1], [], []>} : vector<64x32xf32>, vector<32x8xf32>, vector<64x8xf32> -> vector<64x8xf32>
    %c0_82 = arith.constant 0 : index
    %c0_83 = arith.constant 0 : index
    %255 = vector.load %arg10[%c0_82, %c0_83] : memref<1x8xf32, #tpu.memory_space<vmem>>, vector<1x8xf32>
    %256 = vector.broadcast %255 : vector<1x8xf32> to vector<64x8xf32>
    %257 = arith.addf %254, %256 : vector<64x8xf32>
    %c0_84 = arith.constant 0 : index
    %c0_85 = arith.constant 0 : index
    %258 = vector.load %arg12[%c0_84, %c0_85] : memref<64x8xf32, #tpu.memory_space<vmem>>, vector<64x8xf32>
    tpu.vector_store %arg12[%c0_84, %c0_85], %257 {strides = array<i32>} : memref<64x8xf32, #tpu.memory_space<vmem>>, vector<64x8xf32>,
    return
  }
}

</mosaic_0001>

<llo_original>
// kernel: rnn_forward.1
$region0: #{rnn_forward.1}
  #allocation0 [shape = 'u32[]', space=smem, size = 0x4, offset = 0x4, fixed_abs, tag = 'smem constant byte address 0x4 - core index']
  #allocation1 [shape = 'u32[144,128]{1,0:T(1,128)}', space=vmem, size = 0x12000, scoped, tag = 'internal scratch']
  #allocation2 [shape = 'f32[64,96]{1,0:T(8,128)}', space=vmem, size = 0x8000, scoped, tag = 'scratch operand']
  #allocation3 [shape = 'f32[64,32]{1,0:T(8,128)}', space=vmem, size = 0x8000, scoped, tag = 'scratch operand']
  %s0 = inlined_call_operand.vmem [shape: f32[64,16], index: 0, kind: input, shape index: {}]
  %s1 = inlined_call_operand.vmem [shape: f32[16,32], index: 1, kind: input, shape index: {}]
  %s2 = inlined_call_operand.vmem [shape: f32[1,32], index: 2, kind: input, shape index: {}]
  %s3 = inlined_call_operand.vmem [shape: f32[32,96], index: 3, kind: input, shape index: {}]
  %s4 = inlined_call_operand.vmem [shape: f32[1,96], index: 4, kind: input, shape index: {}]
  %s5 = inlined_call_operand.vmem [shape: f32[32,96], index: 5, kind: input, shape index: {}]
  %s6 = inlined_call_operand.vmem [shape: f32[1,32], index: 6, kind: input, shape index: {}]
  %s7 = inlined_call_operand.vmem [shape: f32[32,32], index: 7, kind: input, shape index: {}]
  %s8 = inlined_call_operand.vmem [shape: f32[1,32], index: 8, kind: input, shape index: {}]
  %s9 = inlined_call_operand.vmem [shape: f32[32,8], index: 9, kind: input, shape index: {}]
  %s10 = inlined_call_operand.vmem [shape: f32[1,8], index: 10, kind: input, shape index: {}]
  %s11 = inlined_call_operand.vmem [shape: f32[8,32], index: 11, kind: input, shape index: {}]
  %s12 = inlined_call_operand.vmem [shape: f32[64,8], index: 12, kind: output, shape index: {0}]
  %s13 = inlined_call_operand.vmem [shape: f32[64,32], index: 13, kind: output, shape index: {1}]
  %s14 = inlined_call_operand.vmem [shape: f32[8,32], index: 14, kind: output, shape index: {2}]
  %15 = xla_tuple %s12, %s13, %s14
  %s16 = sld [smem:[#allocation0]]
  $region74: #{rnn_forward.1} parent=0
    _
  %s18 = ssub.s32 1, %s16
  %s19 = scalar_select 0, %s18, %s16
  // Predicated region
  $region2: #{rnn_forward.1} parent=0 // pred_check
    _
  $region3: #{rnn_forward.1} parent=0 // pred_check_branch
    %21 = sbr.rel (0) target = $region5
  $region4: #{rnn_forward.1} parent=0 // pred_region
    _
  $region5: #{rnn_forward.1} parent=0 // pred_fallthru
    _
  // Predicated region
  $region6: #{rnn_forward.1} parent=0 // pred_check
    _
  $region7: #{rnn_forward.1} parent=0 // pred_check_branch
    %23 = sbr.rel (0) target = $region9
  $region8: #{rnn_forward.1} parent=0 // pred_region
    _
  $region9: #{rnn_forward.1} parent=0 // pred_fallthru
    _
  // Predicated region
  $region10: #{rnn_forward.1} parent=0 // pred_check
    _
  $region11: #{rnn_forward.1} parent=0 // pred_check_branch
    %25 = sbr.rel (0) target = $region13
  $region12: #{rnn_forward.1} parent=0 // pred_region
    _
  $region13: #{rnn_forward.1} parent=0 // pred_fallthru
    _
  // Predicated region
  $region14: #{rnn_forward.1} parent=0 // pred_check
    _
  $region15: #{rnn_forward.1} parent=0 // pred_check_branch
    %27 = sbr.rel (0) target = $region17
  $region16: #{rnn_forward.1} parent=0 // pred_region
    _
  $region17: #{rnn_forward.1} parent=0 // pred_fallthru
    _
  // Predicated region
  $region18: #{rnn_forward.1} parent=0 // pred_check
    _
  $region19: #{rnn_forward.1} parent=0 // pred_check_branch
    %29 = sbr.rel (0) target = $region21
  $region20: #{rnn_forward.1} parent=0 // pred_region
    _
  $region21: #{rnn_forward.1} parent=0 // pred_fallthru
    _
  // Predicated region
  $region22: #{rnn_forward.1} parent=0 // pred_check
    _
  $region23: #{rnn_forward.1} parent=0 // pred_check_branch
    %31 = sbr.rel (0) target = $region25
  $region24: #{rnn_forward.1} parent=0 // pred_region
    _
  $region25: #{rnn_forward.1} parent=0 // pred_fallthru
    _
  // Predicated region
  $region26: #{rnn_forward.1} parent=0 // pred_check
    _
  $region27: #{rnn_forward.1} parent=0 // pred_check_branch
    %33 = sbr.rel (0) target = $region29
  $region28: #{rnn_forward.1} parent=0 // pred_region
    _
  $region29: #{rnn_forward.1} parent=0 // pred_fallthru
    _
  // Predicated region
  $region30: #{rnn_forward.1} parent=0 // pred_check
    _
  $region31: #{rnn_forward.1} parent=0 // pred_check_branch
    %35 = sbr.rel (0) target = $region33
  $region32: #{rnn_forward.1} parent=0 // pred_region
    _
  $region33: #{rnn_forward.1} parent=0 // pred_fallthru
    _
  // Predicated region
  $region34: #{rnn_forward.1} parent=0 // pred_check
    _
  $region35: #{rnn_forward.1} parent=0 // pred_check_branch
    %37 = sbr.rel (0) target = $region37
  $region36: #{rnn_forward.1} parent=0 // pred_region
    _
  $region37: #{rnn_forward.1} parent=0 // pred_fallthru
    _
  // Predicated region
  $region38: #{rnn_forward.1} parent=0 // pred_check
    _
  $region39: #{rnn_forward.1} parent=0 // pred_check_branch
    %39 = sbr.rel (0) target = $region41
  $region40: #{rnn_forward.1} parent=0 // pred_region
    _
  $region41: #{rnn_forward.1} parent=0 // pred_fallthru
    _
  // Predicated region
  $region42: #{rnn_forward.1} parent=0 // pred_check
    _
  $region43: #{rnn_forward.1} parent=0 // pred_check_branch
    %41 = sbr.rel (0) target = $region45
  $region44: #{rnn_forward.1} parent=0 // pred_region
    _
  $region45: #{rnn_forward.1} parent=0 // pred_fallthru
    _
  // Predicated region
  $region46: #{rnn_forward.1} parent=0 // pred_check
    _
  $region47: #{rnn_forward.1} parent=0 // pred_check_branch
    %43 = sbr.rel (0) target = $region49
  $region48: #{rnn_forward.1} parent=0 // pred_region
    _
  $region49: #{rnn_forward.1} parent=0 // pred_fallthru
    _
  %v44 = vld [vmem:[%s0] sm:$0xff]
  %v45 = vld [vmem:[%s0 + $0x8] sm:$0xff]
  %v46 = vld [vmem:[%s0 + $0x10] sm:$0xff]
  %v47 = vld [vmem:[%s0 + $0x18] sm:$0xff]
  %v48 = vld [vmem:[%s0 + $0x20] sm:$0xff]
  %v49 = vld [vmem:[%s0 + $0x28] sm:$0xff]
  %v50 = vld [vmem:[%s0 + $0x30] sm:$0xff]
  %v51 = vld [vmem:[%s0 + $0x38] sm:$0xff]
  %v52 = vld [vmem:[%s1] sm:$0xff]
  %v53 = vld [vmem:[%s1 + $0x8] sm:$0xff]
  %v54 = vld [vmem:[%s2] sm:$0x1]
  %v56 = vlaneseq
  %v57 = vshrl.u32 %v56, 7
  %v58 = vsub.s32 0, %v57
  %v59 = vrot.slane %v54, %v58
  %vm61 = vcmask 130048
  %v63 = vsel %vm61, %v44, 0
  %v66 = vsel %vm61, %v45, 0
  %v69 = vsel %vm61, %v46, 0
  %v72 = vsel %vm61, %v47, 0
  %v75 = vsel %vm61, %v48, 0
  %v78 = vsel %vm61, %v49, 0
  %v81 = vsel %vm61, %v50, 0
  %v84 = vsel %vm61, %v51, 0
  %86 = vmatprep.subr.mxu0 0.0
  %87 = vmatpush1.msra.mxu0 %v52
  %88 = vmatprep.subr.mxu0 0.0
  %89 = vmatpush1.msra.mxu0 %v53
  %90 = vmatprep.subr.mxu0 0.0
  %91 = vmatpush1.msra.mxu0 0.0
  %92 = vmatprep.subr.mxu0 0.0
  %93 = vmatpush1.msra.mxu0 0.0
  %94 = vmatprep.subr.mxu0 0.0
  %95 = vmatpush1.msra.mxu0 0.0
  %96 = vmatprep.subr.mxu0 0.0
  %97 = vmatpush1.msra.mxu0 0.0
  %98 = vmatprep.subr.mxu0 0.0
  %99 = vmatpush1.msra.mxu0 0.0
  %100 = vmatprep.subr.mxu0 0.0
  %101 = vmatpush1.msra.mxu0 0.0
  %102 = vmatprep.subr.mxu0 0.0
  %103 = vmatpush1.msra.mxu0 0.0
  %104 = vmatprep.subr.mxu0 0.0
  %105 = vmatpush1.msra.mxu0 0.0
  %106 = vmatprep.subr.mxu0 0.0
  %107 = vmatpush1.msra.mxu0 0.0
  %108 = vmatprep.subr.mxu0 0.0
  %109 = vmatpush1.msra.mxu0 0.0
  %110 = vmatprep.subr.mxu0 0.0
  %111 = vmatpush1.msra.mxu0 0.0
  %112 = vmatprep.subr.mxu0 0.0
  %113 = vmatpush1.msra.mxu0 0.0
  %114 = vmatprep.subr.mxu0 0.0
  %115 = vmatpush1.msra.mxu0 0.0
  %116 = vmatprep.subr.mxu0 0.0
  %117 = vmatpush1.msra.mxu0 0.0
  %118 = vmatprep.subr.mxu0 0.0
  %119 = vmatpush1.msra.mxu0 0.0
  %120 = vmatprep.subr.mxu0 0.0
  %121 = vmatpush1.msra.mxu0 0.0
  %122 = vmatprep.subr.mxu0 0.0
  %123 = vmatpush1.msra.mxu0 0.0
  %124 = vmatprep.subr.mxu0 0.0
  %125 = vmatpush1.msra.mxu0 0.0
  %126 = vmatprep.subr.mxu0 0.0
  %127 = vmatpush1.msra.mxu0 0.0
  %128 = vmatprep.subr.mxu0 0.0
  %129 = vmatpush1.msra.mxu0 0.0
  %130 = vmatprep.subr.mxu0 0.0
  %131 = vmatpush1.msra.mxu0 0.0
  %132 = vmatprep.subr.mxu0 0.0
  %133 = vmatpush1.msra.mxu0 0.0
  %134 = vmatprep.subr.mxu0 0.0
  %135 = vmatpush1.msra.mxu0 0.0
  %136 = vmatprep.subr.mxu0 0.0
  %137 = vmatpush1.msra.mxu0 0.0
  %138 = vmatprep.subr.mxu0 0.0
  %139 = vmatpush1.msra.mxu0 0.0
  %140 = vmatprep.subr.mxu0 0.0
  %141 = vmatpush1.msra.mxu0 0.0
  %142 = vmatprep.subr.mxu0 0.0
  %143 = vmatpush1.msra.mxu0 0.0
  %144 = vmatprep.subr.mxu0 0.0
  %145 = vmatpush1.msra.mxu0 0.0
  %146 = vmatprep.subr.mxu0 0.0
  %147 = vmatpush1.msra.mxu0 0.0
  %148 = vmatprep.subr.mxu0 0.0
  %149 = vmatpush1.msra.mxu0 0.0
  %150 = vmatprep.mubr.f32.mxu0 0.0
  %151 = vmatmul.mubr.f32.gmra.mrb[0].mxu0 %v63
  %v152 = vpop.f32.mrb[0].mxu0
  %v153 = vadd.f32 %v59, %v152
  %v154 = vpop.f32.mrb[0].mxu0
  %155 = vmatprep.mubr.f32.mxu0 0.0
  %156 = vmatmul.mubr.f32.gmra.mrb[0].mxu0 %v66
  %v157 = vpop.f32.mrb[0].mxu0
  %v158 = vadd.f32 %v59, %v157
  %v159 = vpop.f32.mrb[0].mxu0
  %160 = vmatprep.mubr.f32.mxu0 0.0
  %161 = vmatmul.mubr.f32.gmra.mrb[0].mxu0 %v69
  %v162 = vpop.f32.mrb[0].mxu0
  %v163 = vadd.f32 %v59, %v162
  %v164 = vpop.f32.mrb[0].mxu0
  %165 = vmatprep.mubr.f32.mxu0 0.0
  %166 = vmatmul.mubr.f32.gmra.mrb[0].mxu0 %v72
  %v167 = vpop.f32.mrb[0].mxu0
  %v168 = vadd.f32 %v59, %v167
  %v169 = vpop.f32.mrb[0].mxu0
  %170 = vmatprep.mubr.f32.mxu0 0.0
  %171 = vmatmul.mubr.f32.gmra.mrb[0].mxu0 %v75
  %v172 = vpop.f32.mrb[0].mxu0
  %v173 = vadd.f32 %v59, %v172
  %v174 = vpop.f32.mrb[0].mxu0
  %175 = vmatprep.mubr.f32.mxu0 0.0
  %176 = vmatmul.mubr.f32.gmra.mrb[0].mxu0 %v78
  %v177 = vpop.f32.mrb[0].mxu0
  %v178 = vadd.f32 %v59, %v177
  %v179 = vpop.f32.mrb[0].mxu0
  %180 = vmatprep.mubr.f32.mxu0 0.0
  %181 = vmatmul.mubr.f32.gmra.mrb[0].mxu0 %v81
  %v182 = vpop.f32.mrb[0].mxu0
  %v183 = vadd.f32 %v59, %v182
  %v184 = vpop.f32.mrb[0].mxu0
  %185 = vmatprep.mubr.f32.mxu0 0.0
  %186 = vmatmul.mubr.f32.gmra.mrb[0].mxu0 %v84
  %v187 = vpop.f32.mrb[0].mxu0
  %v188 = vadd.f32 %v59, %v187
  %v189 = vpop.f32.mrb[0].mxu0
  %190 = vdwg.mxu0
  %v191 = vmax.f32 %v153, 0.0
  %v192 = vmax.f32 %v158, 0.0
  %v193 = vmax.f32 %v163, 0.0
  %v194 = vmax.f32 %v168, 0.0
  %v195 = vmax.f32 %v173, 0.0
  %v196 = vmax.f32 %v178, 0.0
  %v197 = vmax.f32 %v183, 0.0
  %v198 = vmax.f32 %v188, 0.0
  %v199 = vld [vmem:[%s3] sm:$0xff]
  %v200 = vld [vmem:[%s3 + $0x8] sm:$0xff]
  %v201 = vld [vmem:[%s3 + $0x10] sm:$0xff]
  %v202 = vld [vmem:[%s3 + $0x18] sm:$0xff]
  %v203 = vld [vmem:[%s4] sm:$0x1]
  %v205 = vlaneseq
  %v206 = vshrl.u32 %v205, 7
  %v207 = vsub.s32 0, %v206
  %v208 = vrot.slane %v203, %v207
  %vm210 = vcmask 261120
  %v212 = vsel %vm210, %v191, 0
  %v215 = vsel %vm210, %v192, 0
  %v218 = vsel %vm210, %v193, 0
  %v221 = vsel %vm210, %v194, 0
  %v224 = vsel %vm210, %v195, 0
  %v227 = vsel %vm210, %v196, 0
  %v230 = vsel %vm210, %v197, 0
  %v233 = vsel %vm210, %v198, 0
  %235 = vmatprep.subr.mxu0 0.0
  %236 = vmatpush1.msra.mxu0 %v199
  %237 = vmatprep.subr.mxu0 0.0
  %238 = vmatpush1.msra.mxu0 %v200
  %239 = vmatprep.subr.mxu0 0.0
  %240 = vmatpush1.msra.mxu0 %v201
  %241 = vmatprep.subr.mxu0 0.0
  %242 = vmatpush1.msra.mxu0 %v202
  %243 = vmatprep.subr.mxu0 0.0
  %244 = vmatpush1.msra.mxu0 0.0
  %245 = vmatprep.subr.mxu0 0.0
  %246 = vmatpush1.msra.mxu0 0.0
  %247 = vmatprep.subr.mxu0 0.0
  %248 = vmatpush1.msra.mxu0 0.0
  %249 = vmatprep.subr.mxu0 0.0
  %250 = vmatpush1.msra.mxu0 0.0
  %251 = vmatprep.subr.mxu0 0.0
  %252 = vmatpush1.msra.mxu0 0.0
  %253 = vmatprep.subr.mxu0 0.0
  %254 = vmatpush1.msra.mxu0 0.0
  %255 = vmatprep.subr.mxu0 0.0
  %256 = vmatpush1.msra.mxu0 0.0
  %257 = vmatprep.subr.mxu0 0.0
  %258 = vmatpush1.msra.mxu0 0.0
  %259 = vmatprep.subr.mxu0 0.0
  %260 = vmatpush1.msra.mxu0 0.0
  %261 = vmatprep.subr.mxu0 0.0
  %262 = vmatpush1.msra.mxu0 0.0
  %263 = vmatprep.subr.mxu0 0.0
  %264 = vmatpush1.msra.mxu0 0.0
  %265 = vmatprep.subr.mxu0 0.0
  %266 = vmatpush1.msra.mxu0 0.0
  %267 = vmatprep.subr.mxu0 0.0
  %268 = vmatpush1.msra.mxu0 0.0
  %269 = vmatprep.subr.mxu0 0.0
  %270 = vmatpush1.msra.mxu0 0.0
  %271 = vmatprep.subr.mxu0 0.0
  %272 = vmatpush1.msra.mxu0 0.0
  %273 = vmatprep.subr.mxu0 0.0
  %274 = vmatpush1.msra.mxu0 0.0
  %275 = vmatprep.subr.mxu0 0.0
  %276 = vmatpush1.msra.mxu0 0.0
  %277 = vmatprep.subr.mxu0 0.0
  %278 = vmatpush1.msra.mxu0 0.0
  %279 = vmatprep.subr.mxu0 0.0
  %280 = vmatpush1.msra.mxu0 0.0
  %281 = vmatprep.subr.mxu0 0.0
  %282 = vmatpush1.msra.mxu0 0.0
  %283 = vmatprep.subr.mxu0 0.0
  %284 = vmatpush1.msra.mxu0 0.0
  %285 = vmatprep.subr.mxu0 0.0
  %286 = vmatpush1.msra.mxu0 0.0
  %287 = vmatprep.subr.mxu0 0.0
  %288 = vmatpush1.msra.mxu0 0.0
  %289 = vmatprep.subr.mxu0 0.0
  %290 = vmatpush1.msra.mxu0 0.0
  %291 = vmatprep.subr.mxu0 0.0
  %292 = vmatpush1.msra.mxu0 0.0
  %293 = vmatprep.subr.mxu0 0.0
  %294 = vmatpush1.msra.mxu0 0.0
  %295 = vmatprep.subr.mxu0 0.0
  %296 = vmatpush1.msra.mxu0 0.0
  %297 = vmatprep.subr.mxu0 0.0
  %298 = vmatpush1.msra.mxu0 0.0
  %299 = vmatprep.mubr.f32.mxu0 0.0
  %300 = vmatmul.mubr.f32.gmra.mrb[0].mxu0 %v212
  %v301 = vpop.f32.mrb[0].mxu0
  %v302 = vadd.f32 %v208, %v301
  %v303 = vpop.f32.mrb[0].mxu0
  %304 = vmatprep.mubr.f32.mxu0 0.0
  %305 = vmatmul.mubr.f32.gmra.mrb[0].mxu0 %v215
  %v306 = vpop.f32.mrb[0].mxu0
  %v307 = vadd.f32 %v208, %v306
  %v308 = vpop.f32.mrb[0].mxu0
  %309 = vmatprep.mubr.f32.mxu0 0.0
  %310 = vmatmul.mubr.f32.gmra.mrb[0].mxu0 %v218
  %v311 = vpop.f32.mrb[0].mxu0
  %v312 = vadd.f32 %v208, %v311
  %v313 = vpop.f32.mrb[0].mxu0
  %314 = vmatprep.mubr.f32.mxu0 0.0
  %315 = vmatmul.mubr.f32.gmra.mrb[0].mxu0 %v221
  %v316 = vpop.f32.mrb[0].mxu0
  %v317 = vadd.f32 %v208, %v316
  %v318 = vpop.f32.mrb[0].mxu0
  %319 = vmatprep.mubr.f32.mxu0 0.0
  %320 = vmatmul.mubr.f32.gmra.mrb[0].mxu0 %v224
  %v321 = vpop.f32.mrb[0].mxu0
  %v322 = vadd.f32 %v208, %v321
  %v323 = vpop.f32.mrb[0].mxu0
  %324 = vmatprep.mubr.f32.mxu0 0.0
  %325 = vmatmul.mubr.f32.gmra.mrb[0].mxu0 %v227
  %v326 = vpop.f32.mrb[0].mxu0
  %v327 = vadd.f32 %v208, %v326
  %v328 = vpop.f32.mrb[0].mxu0
  %329 = vmatprep.mubr.f32.mxu0 0.0
  %330 = vmatmul.mubr.f32.gmra.mrb[0].mxu0 %v230
  %v331 = vpop.f32.mrb[0].mxu0
  %v332 = vadd.f32 %v208, %v331
  %v333 = vpop.f32.mrb[0].mxu0
  %334 = vmatprep.mubr.f32.mxu0 0.0
  %335 = vmatmul.mubr.f32.gmra.mrb[0].mxu0 %v233
  %v336 = vpop.f32.mrb[0].mxu0
  %v337 = vadd.f32 %v208, %v336
  %v338 = vpop.f32.mrb[0].mxu0
  %339 = vdwg.mxu0
  %vm340 = vcmask 785408
  %341 = vst.msk [vmem:[#allocation2] sm:$0xff] %vm340, %v302
  %342 = vst.msk [vmem:[#allocation2 + $0x8] sm:$0xff] %vm340, %v307
  %343 = vst.msk [vmem:[#allocation2 + $0x10] sm:$0xff] %vm340, %v312
  %344 = vst.msk [vmem:[#allocation2 + $0x18] sm:$0xff] %vm340, %v317
  %345 = vst.msk [vmem:[#allocation2 + $0x20] sm:$0xff] %vm340, %v322
  %346 = vst.msk [vmem:[#allocation2 + $0x28] sm:$0xff] %vm340, %v327
  %347 = vst.msk [vmem:[#allocation2 + $0x30] sm:$0xff] %vm340, %v332
  %348 = vst.msk [vmem:[#allocation2 + $0x38] sm:$0xff] %vm340, %v337
  %v349 = vld [vmem:[%s5] sm:$0xff]
  %v350 = vld [vmem:[%s5 + $0x8] sm:$0xff]
  %v351 = vld [vmem:[%s5 + $0x10] sm:$0xff]
  %v352 = vld [vmem:[%s5 + $0x18] sm:$0xff]
  %v353 = vld [vmem:[%s6] sm:$0x1]
  %v355 = vlaneseq
  %v356 = vshrl.u32 %v355, 7
  %v357 = vsub.s32 0, %v356
  %v358 = vrot.slane %v353, %v357
  %v359 = vld [vmem:[%s11] sm:$0xff]
  %v360 = vld [vmem:[#allocation2] sm:$0xff]
  %v362 = vsel %vm210, %v359, 0
  %364 = vmatprep.subr.mxu0 0.0
  %365 = vmatpush1.msra.mxu0 %v349
  %366 = vmatprep.subr.mxu0 0.0
  %367 = vmatpush1.msra.mxu0 %v350
  %368 = vmatprep.subr.mxu0 0.0
  %369 = vmatpush1.msra.mxu0 %v351
  %370 = vmatprep.subr.mxu0 0.0
  %371 = vmatpush1.msra.mxu0 %v352
  %372 = vmatprep.subr.mxu0 0.0
  %373 = vmatpush1.msra.mxu0 0.0
  %374 = vmatprep.subr.mxu0 0.0
  %375 = vmatpush1.msra.mxu0 0.0
  %376 = vmatprep.subr.mxu0 0.0
  %377 = vmatpush1.msra.mxu0 0.0
  %378 = vmatprep.subr.mxu0 0.0
  %379 = vmatpush1.msra.mxu0 0.0
  %380 = vmatprep.subr.mxu0 0.0
  %381 = vmatpush1.msra.mxu0 0.0
  %382 = vmatprep.subr.mxu0 0.0
  %383 = vmatpush1.msra.mxu0 0.0
  %384 = vmatprep.subr.mxu0 0.0
  %385 = vmatpush1.msra.mxu0 0.0
  %386 = vmatprep.subr.mxu0 0.0
  %387 = vmatpush1.msra.mxu0 0.0
  %388 = vmatprep.subr.mxu0 0.0
  %389 = vmatpush1.msra.mxu0 0.0
  %390 = vmatprep.subr.mxu0 0.0
  %391 = vmatpush1.msra.mxu0 0.0
  %392 = vmatprep.subr.mxu0 0.0
  %393 = vmatpush1.msra.mxu0 0.0
  %394 = vmatprep.subr.mxu0 0.0
  %395 = vmatpush1.msra.mxu0 0.0
  %396 = vmatprep.subr.mxu0 0.0
  %397 = vmatpush1.msra.mxu0 0.0
  %398 = vmatprep.subr.mxu0 0.0
  %399 = vmatpush1.msra.mxu0 0.0
  %400 = vmatprep.subr.mxu0 0.0
  %401 = vmatpush1.msra.mxu0 0.0
  %402 = vmatprep.subr.mxu0 0.0
  %403 = vmatpush1.msra.mxu0 0.0
  %404 = vmatprep.subr.mxu0 0.0
  %405 = vmatpush1.msra.mxu0 0.0
  %406 = vmatprep.subr.mxu0 0.0
  %407 = vmatpush1.msra.mxu0 0.0
  %408 = vmatprep.subr.mxu0 0.0
  %409 = vmatpush1.msra.mxu0 0.0
  %410 = vmatprep.subr.mxu0 0.0
  %411 = vmatpush1.msra.mxu0 0.0
  %412 = vmatprep.subr.mxu0 0.0
  %413 = vmatpush1.msra.mxu0 0.0
  %414 = vmatprep.subr.mxu0 0.0
  %415 = vmatpush1.msra.mxu0 0.0
  %416 = vmatprep.subr.mxu0 0.0
  %417 = vmatpush1.msra.mxu0 0.0
  %418 = vmatprep.subr.mxu0 0.0
  %419 = vmatpush1.msra.mxu0 0.0
  %420 = vmatprep.subr.mxu0 0.0
  %421 = vmatpush1.msra.mxu0 0.0
  %422 = vmatprep.subr.mxu0 0.0
  %423 = vmatpush1.msra.mxu0 0.0
  %424 = vmatprep.subr.mxu0 0.0
  %425 = vmatpush1.msra.mxu0 0.0
  %426 = vmatprep.subr.mxu0 0.0
  %427 = vmatpush1.msra.mxu0 0.0
  %428 = vmatprep.mubr.f32.mxu0 0.0
  %429 = vmatmul.mubr.f32.gmra.mrb[0].mxu0 %v362
  %v430 = vpop.f32.mrb[0].mxu0
  %v431 = vadd.f32 0.0, %v430
  %v432 = vpop.f32.mrb[0].mxu0
  %433 = vdwg.mxu0
  %v434 = vadd.f32 %v360, %v431
  %v435 = vxor.u32 %v434, 2147483648
  %v436 = vmul.f32 %v435, 1.442695
  %v437 = vpow.pop %v436
  %v438 = vadd.f32 %v437, 1.0
  %v439 = vrcp.pop %v438
  %v440 = vmul.f32 1.0, %v439
  %441 = vrot.lane.b32.xlu0 %v358, 64
  %v442 = vpop.permute.xlu0 %441
  %v444 = vadd.f32 %v431, %v442
  %446 = vrot.lane.b32.xlu0 %v444, 64
  %v447 = vpop.permute.xlu0 %446
  %v449 = vmul.f32 %v440, %v447
  %451 = vrot.lane.b32.xlu0 %v449, 64
  %v452 = vpop.permute.xlu0 %451
  %v454 = vadd.f32 %v360, %v452
  %v455 = vtanh.pop %v454
  %v456 = vsub.f32 1.0, %v440
  %458 = vrot.lane.b32.xlu0 %v455, 96
  %v459 = vpop.permute.xlu0 %458
  %v461 = vmul.f32 %v456, %v459
  %462 = vrot.lane.b32.xlu0 %v359, 32
  %v463 = vpop.permute.xlu0 %462
  %v465 = vmul.f32 %v440, %v463
  %v466 = vadd.f32 %v461, %v465
  %468 = vrot.lane.b32.xlu0 %v466, 96
  %v469 = vpop.permute.xlu0 %468
  %471 = vst.msk [vmem:[#allocation3] sm:$0xff] %vm210, %v469
  %s472 = scalar_lea.vmem [#allocation2], 8
  %v473 = vld [vmem:[%s472] sm:$0xff]
  %v474 = vsel %vm210, %v469, 0
  %476 = vmatprep.subr.mxu0 0.0
  %477 = vmatpush1.msra.mxu0 %v349
  %478 = vmatprep.subr.mxu0 0.0
  %479 = vmatpush1.msra.mxu0 %v350
  %480 = vmatprep.subr.mxu0 0.0
  %481 = vmatpush1.msra.mxu0 %v351
  %482 = vmatprep.subr.mxu0 0.0
  %483 = vmatpush1.msra.mxu0 %v352
  %484 = vmatprep.subr.mxu0 0.0
  %485 = vmatpush1.msra.mxu0 0.0
  %486 = vmatprep.subr.mxu0 0.0
  %487 = vmatpush1.msra.mxu0 0.0
  %488 = vmatprep.subr.mxu0 0.0
  %489 = vmatpush1.msra.mxu0 0.0
  %490 = vmatprep.subr.mxu0 0.0
  %491 = vmatpush1.msra.mxu0 0.0
  %492 = vmatprep.subr.mxu0 0.0
  %493 = vmatpush1.msra.mxu0 0.0
  %494 = vmatprep.subr.mxu0 0.0
  %495 = vmatpush1.msra.mxu0 0.0
  %496 = vmatprep.subr.mxu0 0.0
  %497 = vmatpush1.msra.mxu0 0.0
  %498 = vmatprep.subr.mxu0 0.0
  %499 = vmatpush1.msra.mxu0 0.0
  %500 = vmatprep.subr.mxu0 0.0
  %501 = vmatpush1.msra.mxu0 0.0
  %502 = vmatprep.subr.mxu0 0.0
  %503 = vmatpush1.msra.mxu0 0.0
  %504 = vmatprep.subr.mxu0 0.0
  %505 = vmatpush1.msra.mxu0 0.0
  %506 = vmatprep.subr.mxu0 0.0
  %507 = vmatpush1.msra.mxu0 0.0
  %508 = vmatprep.subr.mxu0 0.0
  %509 = vmatpush1.msra.mxu0 0.0
  %510 = vmatprep.subr.mxu0 0.0
  %511 = vmatpush1.msra.mxu0 0.0
  %512 = vmatprep.subr.mxu0 0.0
  %513 = vmatpush1.msra.mxu0 0.0
  %514 = vmatprep.subr.mxu0 0.0
  %515 = vmatpush1.msra.mxu0 0.0
  %516 = vmatprep.subr.mxu0 0.0
  %517 = vmatpush1.msra.mxu0 0.0
  %518 = vmatprep.subr.mxu0 0.0
  %519 = vmatpush1.msra.mxu0 0.0
  %520 = vmatprep.subr.mxu0 0.0
  %521 = vmatpush1.msra.mxu0 0.0
  %522 = vmatprep.subr.mxu0 0.0
  %523 = vmatpush1.msra.mxu0 0.0
  %524 = vmatprep.subr.mxu0 0.0
  %525 = vmatpush1.msra.mxu0 0.0
  %526 = vmatprep.subr.mxu0 0.0
  %527 = vmatpush1.msra.mxu0 0.0
  %528 = vmatprep.subr.mxu0 0.0
  %529 = vmatpush1.msra.mxu0 0.0
  %530 = vmatprep.subr.mxu0 0.0
  %531 = vmatpush1.msra.mxu0 0.0
  %532 = vmatprep.subr.mxu0 0.0
  %533 = vmatpush1.msra.mxu0 0.0
  %534 = vmatprep.subr.mxu0 0.0
  %535 = vmatpush1.msra.mxu0 0.0
  %536 = vmatprep.subr.mxu0 0.0
  %537 = vmatpush1.msra.mxu0 0.0
  %538 = vmatprep.subr.mxu0 0.0
  %539 = vmatpush1.msra.mxu0 0.0
  %540 = vmatprep.mubr.f32.mxu0 0.0
  %541 = vmatmul.mubr.f32.gmra.mrb[0].mxu0 %v474
  %v542 = vpop.f32.mrb[0].mxu0
  %v543 = vadd.f32 0.0, %v542
  %v544 = vpop.f32.mrb[0].mxu0
  %545 = vdwg.mxu0
  %v546 = vadd.f32 %v473, %v543
  %v547 = vxor.u32 %v546, 2147483648
  %v548 = vmul.f32 %v547, 1.442695
  %v549 = vpow.pop %v548
  %v550 = vadd.f32 %v549, 1.0
  %v551 = vrcp.pop %v550
  %v552 = vmul.f32 1.0, %v551
  %v553 = vadd.f32 %v543, %v442
  %555 = vrot.lane.b32.xlu0 %v553, 64
  %v556 = vpop.permute.xlu0 %555
  %v558 = vmul.f32 %v552, %v556
  %560 = vrot.lane.b32.xlu0 %v558, 64
  %v561 = vpop.permute.xlu0 %560
  %v563 = vadd.f32 %v473, %v561
  %v564 = vtanh.pop %v563
  %v565 = vsub.f32 1.0, %v552
  %567 = vrot.lane.b32.xlu0 %v564, 96
  %v568 = vpop.permute.xlu0 %567
  %v570 = vmul.f32 %v565, %v568
  %v571 = vmul.f32 %v552, %v466
  %v572 = vadd.f32 %v570, %v571
  %574 = vrot.lane.b32.xlu0 %v572, 96
  %v575 = vpop.permute.xlu0 %574
  %s577 = scalar_lea.vmem [#allocation3], 8
  %578 = vst.msk [vmem:[%s577] sm:$0xff] %vm210, %v575
  %s579 = scalar_lea.vmem [#allocation2], 16
  %v580 = vld [vmem:[%s579] sm:$0xff]
  %v581 = vsel %vm210, %v575, 0
  %583 = vmatprep.subr.mxu0 0.0
  %584 = vmatpush1.msra.mxu0 %v349
  %585 = vmatprep.subr.mxu0 0.0
  %586 = vmatpush1.msra.mxu0 %v350
  %587 = vmatprep.subr.mxu0 0.0
  %588 = vmatpush1.msra.mxu0 %v351
  %589 = vmatprep.subr.mxu0 0.0
  %590 = vmatpush1.msra.mxu0 %v352
  %591 = vmatprep.subr.mxu0 0.0
  %592 = vmatpush1.msra.mxu0 0.0
  %593 = vmatprep.subr.mxu0 0.0
  %594 = vmatpush1.msra.mxu0 0.0
  %595 = vmatprep.subr.mxu0 0.0
  %596 = vmatpush1.msra.mxu0 0.0
  %597 = vmatprep.subr.mxu0 0.0
  %598 = vmatpush1.msra.mxu0 0.0
  %599 = vmatprep.subr.mxu0 0.0
  %600 = vmatpush1.msra.mxu0 0.0
  %601 = vmatprep.subr.mxu0 0.0
  %602 = vmatpush1.msra.mxu0 0.0
  %603 = vmatprep.subr.mxu0 0.0
  %604 = vmatpush1.msra.mxu0 0.0
  %605 = vmatprep.subr.mxu0 0.0
  %606 = vmatpush1.msra.mxu0 0.0
  %607 = vmatprep.subr.mxu0 0.0
  %608 = vmatpush1.msra.mxu0 0.0
  %609 = vmatprep.subr.mxu0 0.0
  %610 = vmatpush1.msra.mxu0 0.0
  %611 = vmatprep.subr.mxu0 0.0
  %612 = vmatpush1.msra.mxu0 0.0
  %613 = vmatprep.subr.mxu0 0.0
  %614 = vmatpush1.msra.mxu0 0.0
  %615 = vmatprep.subr.mxu0 0.0
  %616 = vmatpush1.msra.mxu0 0.0
  %617 = vmatprep.subr.mxu0 0.0
  %618 = vmatpush1.msra.mxu0 0.0
  %619 = vmatprep.subr.mxu0 0.0
  %620 = vmatpush1.msra.mxu0 0.0
  %621 = vmatprep.subr.mxu0 0.0
  %622 = vmatpush1.msra.mxu0 0.0
  %623 = vmatprep.subr.mxu0 0.0
  %624 = vmatpush1.msra.mxu0 0.0
  %625 = vmatprep.subr.mxu0 0.0
  %626 = vmatpush1.msra.mxu0 0.0
  %627 = vmatprep.subr.mxu0 0.0
  %628 = vmatpush1.msra.mxu0 0.0
  %629 = vmatprep.subr.mxu0 0.0
  %630 = vmatpush1.msra.mxu0 0.0
  %631 = vmatprep.subr.mxu0 0.0
  %632 = vmatpush1.msra.mxu0 0.0
  %633 = vmatprep.subr.mxu0 0.0
  %634 = vmatpush1.msra.mxu0 0.0
  %635 = vmatprep.subr.mxu0 0.0
  %636 = vmatpush1.msra.mxu0 0.0
  %637 = vmatprep.subr.mxu0 0.0
  %638 = vmatpush1.msra.mxu0 0.0
  %639 = vmatprep.subr.mxu0 0.0
  %640 = vmatpush1.msra.mxu0 0.0
  %641 = vmatprep.subr.mxu0 0.0
  %642 = vmatpush1.msra.mxu0 0.0
  %643 = vmatprep.subr.mxu0 0.0
  %644 = vmatpush1.msra.mxu0 0.0
  %645 = vmatprep.subr.mxu0 0.0
  %646 = vmatpush1.msra.mxu0 0.0
  %647 = vmatprep.mubr.f32.mxu0 0.0
  %648 = vmatmul.mubr.f32.gmra.mrb[0].mxu0 %v581
  %v649 = vpop.f32.mrb[0].mxu0
  %v650 = vadd.f32 0.0, %v649
  %v651 = vpop.f32.mrb[0].mxu0
  %652 = vdwg.mxu0
  %v653 = vadd.f32 %v580, %v650
  %v654 = vxor.u32 %v653, 2147483648
  %v655 = vmul.f32 %v654, 1.442695
  %v656 = vpow.pop %v655
  %v657 = vadd.f32 %v656, 1.0
  %v658 = vrcp.pop %v657
  %v659 = vmul.f32 1.0, %v658
  %v660 = vadd.f32 %v650, %v442
  %662 = vrot.lane.b32.xlu0 %v660, 64
  %v663 = vpop.permute.xlu0 %662
  %v665 = vmul.f32 %v659, %v663
  %667 = vrot.lane.b32.xlu0 %v665, 64
  %v668 = vpop.permute.xlu0 %667
  %v670 = vadd.f32 %v580, %v668
  %v671 = vtanh.pop %v670
  %v672 = vsub.f32 1.0, %v659
  %674 = vrot.lane.b32.xlu0 %v671, 96
  %v675 = vpop.permute.xlu0 %674
  %v677 = vmul.f32 %v672, %v675
  %v678 = vmul.f32 %v659, %v572
  %v679 = vadd.f32 %v677, %v678
  %681 = vrot.lane.b32.xlu0 %v679, 96
  %v682 = vpop.permute.xlu0 %681
  %s684 = scalar_lea.vmem [#allocation3], 16
  %685 = vst.msk [vmem:[%s684] sm:$0xff] %vm210, %v682
  %s686 = scalar_lea.vmem [#allocation2], 24
  %v687 = vld [vmem:[%s686] sm:$0xff]
  %v688 = vsel %vm210, %v682, 0
  %690 = vmatprep.subr.mxu0 0.0
  %691 = vmatpush1.msra.mxu0 %v349
  %692 = vmatprep.subr.mxu0 0.0
  %693 = vmatpush1.msra.mxu0 %v350
  %694 = vmatprep.subr.mxu0 0.0
  %695 = vmatpush1.msra.mxu0 %v351
  %696 = vmatprep.subr.mxu0 0.0
  %697 = vmatpush1.msra.mxu0 %v352
  %698 = vmatprep.subr.mxu0 0.0
  %699 = vmatpush1.msra.mxu0 0.0
  %700 = vmatprep.subr.mxu0 0.0
  %701 = vmatpush1.msra.mxu0 0.0
  %702 = vmatprep.subr.mxu0 0.0
  %703 = vmatpush1.msra.mxu0 0.0
  %704 = vmatprep.subr.mxu0 0.0
  %705 = vmatpush1.msra.mxu0 0.0
  %706 = vmatprep.subr.mxu0 0.0
  %707 = vmatpush1.msra.mxu0 0.0
  %708 = vmatprep.subr.mxu0 0.0
  %709 = vmatpush1.msra.mxu0 0.0
  %710 = vmatprep.subr.mxu0 0.0
  %711 = vmatpush1.msra.mxu0 0.0
  %712 = vmatprep.subr.mxu0 0.0
  %713 = vmatpush1.msra.mxu0 0.0
  %714 = vmatprep.subr.mxu0 0.0
  %715 = vmatpush1.msra.mxu0 0.0
  %716 = vmatprep.subr.mxu0 0.0
  %717 = vmatpush1.msra.mxu0 0.0
  %718 = vmatprep.subr.mxu0 0.0
  %719 = vmatpush1.msra.mxu0 0.0
  %720 = vmatprep.subr.mxu0 0.0
  %721 = vmatpush1.msra.mxu0 0.0
  %722 = vmatprep.subr.mxu0 0.0
  %723 = vmatpush1.msra.mxu0 0.0
  %724 = vmatprep.subr.mxu0 0.0
  %725 = vmatpush1.msra.mxu0 0.0
  %726 = vmatprep.subr.mxu0 0.0
  %727 = vmatpush1.msra.mxu0 0.0
  %728 = vmatprep.subr.mxu0 0.0
  %729 = vmatpush1.msra.mxu0 0.0
  %730 = vmatprep.subr.mxu0 0.0
  %731 = vmatpush1.msra.mxu0 0.0
  %732 = vmatprep.subr.mxu0 0.0
  %733 = vmatpush1.msra.mxu0 0.0
  %734 = vmatprep.subr.mxu0 0.0
  %735 = vmatpush1.msra.mxu0 0.0
  %736 = vmatprep.subr.mxu0 0.0
  %737 = vmatpush1.msra.mxu0 0.0
  %738 = vmatprep.subr.mxu0 0.0
  %739 = vmatpush1.msra.mxu0 0.0
  %740 = vmatprep.subr.mxu0 0.0
  %741 = vmatpush1.msra.mxu0 0.0
  %742 = vmatprep.subr.mxu0 0.0
  %743 = vmatpush1.msra.mxu0 0.0
  %744 = vmatprep.subr.mxu0 0.0
  %745 = vmatpush1.msra.mxu0 0.0
  %746 = vmatprep.subr.mxu0 0.0
  %747 = vmatpush1.msra.mxu0 0.0
  %748 = vmatprep.subr.mxu0 0.0
  %749 = vmatpush1.msra.mxu0 0.0
  %750 = vmatprep.subr.mxu0 0.0
  %751 = vmatpush1.msra.mxu0 0.0
  %752 = vmatprep.subr.mxu0 0.0
  %753 = vmatpush1.msra.mxu0 0.0
  %754 = vmatprep.mubr.f32.mxu0 0.0
  %755 = vmatmul.mubr.f32.gmra.mrb[0].mxu0 %v688
  %v756 = vpop.f32.mrb[0].mxu0
  %v757 = vadd.f32 0.0, %v756
  %v758 = vpop.f32.mrb[0].mxu0
  %759 = vdwg.mxu0
  %v760 = vadd.f32 %v687, %v757
  %v761 = vxor.u32 %v760, 2147483648
  %v762 = vmul.f32 %v761, 1.442695
  %v763 = vpow.pop %v762
  %v764 = vadd.f32 %v763, 1.0
  %v765 = vrcp.pop %v764
  %v766 = vmul.f32 1.0, %v765
  %v767 = vadd.f32 %v757, %v442
  %769 = vrot.lane.b32.xlu0 %v767, 64
  %v770 = vpop.permute.xlu0 %769
  %v772 = vmul.f32 %v766, %v770
  %774 = vrot.lane.b32.xlu0 %v772, 64
  %v775 = vpop.permute.xlu0 %774
  %v777 = vadd.f32 %v687, %v775
  %v778 = vtanh.pop %v777
  %v779 = vsub.f32 1.0, %v766
  %781 = vrot.lane.b32.xlu0 %v778, 96
  %v782 = vpop.permute.xlu0 %781
  %v784 = vmul.f32 %v779, %v782
  %v785 = vmul.f32 %v766, %v679
  %v786 = vadd.f32 %v784, %v785
  %788 = vrot.lane.b32.xlu0 %v786, 96
  %v789 = vpop.permute.xlu0 %788
  %s791 = scalar_lea.vmem [#allocation3], 24
  %792 = vst.msk [vmem:[%s791] sm:$0xff] %vm210, %v789
  %s793 = scalar_lea.vmem [#allocation2], 32
  %v794 = vld [vmem:[%s793] sm:$0xff]
  %v795 = vsel %vm210, %v789, 0
  %797 = vmatprep.subr.mxu0 0.0
  %798 = vmatpush1.msra.mxu0 %v349
  %799 = vmatprep.subr.mxu0 0.0
  %800 = vmatpush1.msra.mxu0 %v350
  %801 = vmatprep.subr.mxu0 0.0
  %802 = vmatpush1.msra.mxu0 %v351
  %803 = vmatprep.subr.mxu0 0.0
  %804 = vmatpush1.msra.mxu0 %v352
  %805 = vmatprep.subr.mxu0 0.0
  %806 = vmatpush1.msra.mxu0 0.0
  %807 = vmatprep.subr.mxu0 0.0
  %808 = vmatpush1.msra.mxu0 0.0
  %809 = vmatprep.subr.mxu0 0.0
  %810 = vmatpush1.msra.mxu0 0.0
  %811 = vmatprep.subr.mxu0 0.0
  %812 = vmatpush1.msra.mxu0 0.0
  %813 = vmatprep.subr.mxu0 0.0
  %814 = vmatpush1.msra.mxu0 0.0
  %815 = vmatprep.subr.mxu0 0.0
  %816 = vmatpush1.msra.mxu0 0.0
  %817 = vmatprep.subr.mxu0 0.0
  %818 = vmatpush1.msra.mxu0 0.0
  %819 = vmatprep.subr.mxu0 0.0
  %820 = vmatpush1.msra.mxu0 0.0
  %821 = vmatprep.subr.mxu0 0.0
  %822 = vmatpush1.msra.mxu0 0.0
  %823 = vmatprep.subr.mxu0 0.0
  %824 = vmatpush1.msra.mxu0 0.0
  %825 = vmatprep.subr.mxu0 0.0
  %826 = vmatpush1.msra.mxu0 0.0
  %827 = vmatprep.subr.mxu0 0.0
  %828 = vmatpush1.msra.mxu0 0.0
  %829 = vmatprep.subr.mxu0 0.0
  %830 = vmatpush1.msra.mxu0 0.0
  %831 = vmatprep.subr.mxu0 0.0
  %832 = vmatpush1.msra.mxu0 0.0
  %833 = vmatprep.subr.mxu0 0.0
  %834 = vmatpush1.msra.mxu0 0.0
  %835 = vmatprep.subr.mxu0 0.0
  %836 = vmatpush1.msra.mxu0 0.0
  %837 = vmatprep.subr.mxu0 0.0
  %838 = vmatpush1.msra.mxu0 0.0
  %839 = vmatprep.subr.mxu0 0.0
  %840 = vmatpush1.msra.mxu0 0.0
  %841 = vmatprep.subr.mxu0 0.0
  %842 = vmatpush1.msra.mxu0 0.0
  %843 = vmatprep.subr.mxu0 0.0
  %844 = vmatpush1.msra.mxu0 0.0
  %845 = vmatprep.subr.mxu0 0.0
  %846 = vmatpush1.msra.mxu0 0.0
  %847 = vmatprep.subr.mxu0 0.0
  %848 = vmatpush1.msra.mxu0 0.0
  %849 = vmatprep.subr.mxu0 0.0
  %850 = vmatpush1.msra.mxu0 0.0
  %851 = vmatprep.subr.mxu0 0.0
  %852 = vmatpush1.msra.mxu0 0.0
  %853 = vmatprep.subr.mxu0 0.0
  %854 = vmatpush1.msra.mxu0 0.0
  %855 = vmatprep.subr.mxu0 0.0
  %856 = vmatpush1.msra.mxu0 0.0
  %857 = vmatprep.subr.mxu0 0.0
  %858 = vmatpush1.msra.mxu0 0.0
  %859 = vmatprep.subr.mxu0 0.0
  %860 = vmatpush1.msra.mxu0 0.0
  %861 = vmatprep.mubr.f32.mxu0 0.0
  %862 = vmatmul.mubr.f32.gmra.mrb[0].mxu0 %v795
  %v863 = vpop.f32.mrb[0].mxu0
  %v864 = vadd.f32 0.0, %v863
  %v865 = vpop.f32.mrb[0].mxu0
  %866 = vdwg.mxu0
  %v867 = vadd.f32 %v794, %v864
  %v868 = vxor.u32 %v867, 2147483648
  %v869 = vmul.f32 %v868, 1.442695
  %v870 = vpow.pop %v869
  %v871 = vadd.f32 %v870, 1.0
  %v872 = vrcp.pop %v871
  %v873 = vmul.f32 1.0, %v872
  %v874 = vadd.f32 %v864, %v442
  %876 = vrot.lane.b32.xlu0 %v874, 64
  %v877 = vpop.permute.xlu0 %876
  %v879 = vmul.f32 %v873, %v877
  %881 = vrot.lane.b32.xlu0 %v879, 64
  %v882 = vpop.permute.xlu0 %881
  %v884 = vadd.f32 %v794, %v882
  %v885 = vtanh.pop %v884
  %v886 = vsub.f32 1.0, %v873
  %888 = vrot.lane.b32.xlu0 %v885, 96
  %v889 = vpop.permute.xlu0 %888
  %v891 = vmul.f32 %v886, %v889
  %v892 = vmul.f32 %v873, %v786
  %v893 = vadd.f32 %v891, %v892
  %895 = vrot.lane.b32.xlu0 %v893, 96
  %v896 = vpop.permute.xlu0 %895
  %s898 = scalar_lea.vmem [#allocation3], 32
  %899 = vst.msk [vmem:[%s898] sm:$0xff] %vm210, %v896
  %s900 = scalar_lea.vmem [#allocation2], 40
  %v901 = vld [vmem:[%s900] sm:$0xff]
  %v902 = vsel %vm210, %v896, 0
  %904 = vmatprep.subr.mxu0 0.0
  %905 = vmatpush1.msra.mxu0 %v349
  %906 = vmatprep.subr.mxu0 0.0
  %907 = vmatpush1.msra.mxu0 %v350
  %908 = vmatprep.subr.mxu0 0.0
  %909 = vmatpush1.msra.mxu0 %v351
  %910 = vmatprep.subr.mxu0 0.0
  %911 = vmatpush1.msra.mxu0 %v352
  %912 = vmatprep.subr.mxu0 0.0
  %913 = vmatpush1.msra.mxu0 0.0
  %914 = vmatprep.subr.mxu0 0.0
  %915 = vmatpush1.msra.mxu0 0.0
  %916 = vmatprep.subr.mxu0 0.0
  %917 = vmatpush1.msra.mxu0 0.0
  %918 = vmatprep.subr.mxu0 0.0
  %919 = vmatpush1.msra.mxu0 0.0
  %920 = vmatprep.subr.mxu0 0.0
  %921 = vmatpush1.msra.mxu0 0.0
  %922 = vmatprep.subr.mxu0 0.0
  %923 = vmatpush1.msra.mxu0 0.0
  %924 = vmatprep.subr.mxu0 0.0
  %925 = vmatpush1.msra.mxu0 0.0
  %926 = vmatprep.subr.mxu0 0.0
  %927 = vmatpush1.msra.mxu0 0.0
  %928 = vmatprep.subr.mxu0 0.0
  %929 = vmatpush1.msra.mxu0 0.0
  %930 = vmatprep.subr.mxu0 0.0
  %931 = vmatpush1.msra.mxu0 0.0
  %932 = vmatprep.subr.mxu0 0.0
  %933 = vmatpush1.msra.mxu0 0.0
  %934 = vmatprep.subr.mxu0 0.0
  %935 = vmatpush1.msra.mxu0 0.0
  %936 = vmatprep.subr.mxu0 0.0
  %937 = vmatpush1.msra.mxu0 0.0
  %938 = vmatprep.subr.mxu0 0.0
  %939 = vmatpush1.msra.mxu0 0.0
  %940 = vmatprep.subr.mxu0 0.0
  %941 = vmatpush1.msra.mxu0 0.0
  %942 = vmatprep.subr.mxu0 0.0
  %943 = vmatpush1.msra.mxu0 0.0
  %944 = vmatprep.subr.mxu0 0.0
  %945 = vmatpush1.msra.mxu0 0.0
  %946 = vmatprep.subr.mxu0 0.0
  %947 = vmatpush1.msra.mxu0 0.0
  %948 = vmatprep.subr.mxu0 0.0
  %949 = vmatpush1.msra.mxu0 0.0
  %950 = vmatprep.subr.mxu0 0.0
  %951 = vmatpush1.msra.mxu0 0.0
  %952 = vmatprep.subr.mxu0 0.0
  %953 = vmatpush1.msra.mxu0 0.0
  %954 = vmatprep.subr.mxu0 0.0
  %955 = vmatpush1.msra.mxu0 0.0
  %956 = vmatprep.subr.mxu0 0.0
  %957 = vmatpush1.msra.mxu0 0.0
  %958 = vmatprep.subr.mxu0 0.0
  %959 = vmatpush1.msra.mxu0 0.0
  %960 = vmatprep.subr.mxu0 0.0
  %961 = vmatpush1.msra.mxu0 0.0
  %962 = vmatprep.subr.mxu0 0.0
  %963 = vmatpush1.msra.mxu0 0.0
  %964 = vmatprep.subr.mxu0 0.0
  %965 = vmatpush1.msra.mxu0 0.0
  %966 = vmatprep.subr.mxu0 0.0
  %967 = vmatpush1.msra.mxu0 0.0
  %968 = vmatprep.mubr.f32.mxu0 0.0
  %969 = vmatmul.mubr.f32.gmra.mrb[0].mxu0 %v902
  %v970 = vpop.f32.mrb[0].mxu0
  %v971 = vadd.f32 0.0, %v970
  %v972 = vpop.f32.mrb[0].mxu0
  %973 = vdwg.mxu0
  %v974 = vadd.f32 %v901, %v971
  %v975 = vxor.u32 %v974, 2147483648
  %v976 = vmul.f32 %v975, 1.442695
  %v977 = vpow.pop %v976
  %v978 = vadd.f32 %v977, 1.0
  %v979 = vrcp.pop %v978
  %v980 = vmul.f32 1.0, %v979
  %v981 = vadd.f32 %v971, %v442
  %983 = vrot.lane.b32.xlu0 %v981, 64
  %v984 = vpop.permute.xlu0 %983
  %v986 = vmul.f32 %v980, %v984
  %988 = vrot.lane.b32.xlu0 %v986, 64
  %v989 = vpop.permute.xlu0 %988
  %v991 = vadd.f32 %v901, %v989
  %v992 = vtanh.pop %v991
  %v993 = vsub.f32 1.0, %v980
  %995 = vrot.lane.b32.xlu0 %v992, 96
  %v996 = vpop.permute.xlu0 %995
  %v998 = vmul.f32 %v993, %v996
  %v999 = vmul.f32 %v980, %v893
  %v1000 = vadd.f32 %v998, %v999
  %1002 = vrot.lane.b32.xlu0 %v1000, 96
  %v1003 = vpop.permute.xlu0 %1002
  %s1005 = scalar_lea.vmem [#allocation3], 40
  %1006 = vst.msk [vmem:[%s1005] sm:$0xff] %vm210, %v1003
  %s1007 = scalar_lea.vmem [#allocation2], 48
  %v1008 = vld [vmem:[%s1007] sm:$0xff]
  %v1009 = vsel %vm210, %v1003, 0
  %1011 = vmatprep.subr.mxu0 0.0
  %1012 = vmatpush1.msra.mxu0 %v349
  %1013 = vmatprep.subr.mxu0 0.0
  %1014 = vmatpush1.msra.mxu0 %v350
  %1015 = vmatprep.subr.mxu0 0.0
  %1016 = vmatpush1.msra.mxu0 %v351
  %1017 = vmatprep.subr.mxu0 0.0
  %1018 = vmatpush1.msra.mxu0 %v352
  %1019 = vmatprep.subr.mxu0 0.0
  %1020 = vmatpush1.msra.mxu0 0.0
  %1021 = vmatprep.subr.mxu0 0.0
  %1022 = vmatpush1.msra.mxu0 0.0
  %1023 = vmatprep.subr.mxu0 0.0
  %1024 = vmatpush1.msra.mxu0 0.0
  %1025 = vmatprep.subr.mxu0 0.0
  %1026 = vmatpush1.msra.mxu0 0.0
  %1027 = vmatprep.subr.mxu0 0.0
  %1028 = vmatpush1.msra.mxu0 0.0
  %1029 = vmatprep.subr.mxu0 0.0
  %1030 = vmatpush1.msra.mxu0 0.0
  %1031 = vmatprep.subr.mxu0 0.0
  %1032 = vmatpush1.msra.mxu0 0.0
  %1033 = vmatprep.subr.mxu0 0.0
  %1034 = vmatpush1.msra.mxu0 0.0
  %1035 = vmatprep.subr.mxu0 0.0
  %1036 = vmatpush1.msra.mxu0 0.0
  %1037 = vmatprep.subr.mxu0 0.0
  %1038 = vmatpush1.msra.mxu0 0.0
  %1039 = vmatprep.subr.mxu0 0.0
  %1040 = vmatpush1.msra.mxu0 0.0
  %1041 = vmatprep.subr.mxu0 0.0
  %1042 = vmatpush1.msra.mxu0 0.0
  %1043 = vmatprep.subr.mxu0 0.0
  %1044 = vmatpush1.msra.mxu0 0.0
  %1045 = vmatprep.subr.mxu0 0.0
  %1046 = vmatpush1.msra.mxu0 0.0
  %1047 = vmatprep.subr.mxu0 0.0
  %1048 = vmatpush1.msra.mxu0 0.0
  %1049 = vmatprep.subr.mxu0 0.0
  %1050 = vmatpush1.msra.mxu0 0.0
  %1051 = vmatprep.subr.mxu0 0.0
  %1052 = vmatpush1.msra.mxu0 0.0
  %1053 = vmatprep.subr.mxu0 0.0
  %1054 = vmatpush1.msra.mxu0 0.0
  %1055 = vmatprep.subr.mxu0 0.0
  %1056 = vmatpush1.msra.mxu0 0.0
  %1057 = vmatprep.subr.mxu0 0.0
  %1058 = vmatpush1.msra.mxu0 0.0
  %1059 = vmatprep.subr.mxu0 0.0
  %1060 = vmatpush1.msra.mxu0 0.0
  %1061 = vmatprep.subr.mxu0 0.0
  %1062 = vmatpush1.msra.mxu0 0.0
  %1063 = vmatprep.subr.mxu0 0.0
  %1064 = vmatpush1.msra.mxu0 0.0
  %1065 = vmatprep.subr.mxu0 0.0
  %1066 = vmatpush1.msra.mxu0 0.0
  %1067 = vmatprep.subr.mxu0 0.0
  %1068 = vmatpush1.msra.mxu0 0.0
  %1069 = vmatprep.subr.mxu0 0.0
  %1070 = vmatpush1.msra.mxu0 0.0
  %1071 = vmatprep.subr.mxu0 0.0
  %1072 = vmatpush1.msra.mxu0 0.0
  %1073 = vmatprep.subr.mxu0 0.0
  %1074 = vmatpush1.msra.mxu0 0.0
  %1075 = vmatprep.mubr.f32.mxu0 0.0
  %1076 = vmatmul.mubr.f32.gmra.mrb[0].mxu0 %v1009
  %v1077 = vpop.f32.mrb[0].mxu0
  %v1078 = vadd.f32 0.0, %v1077
  %v1079 = vpop.f32.mrb[0].mxu0
  %1080 = vdwg.mxu0
  %v1081 = vadd.f32 %v1008, %v1078
  %v1082 = vxor.u32 %v1081, 2147483648
  %v1083 = vmul.f32 %v1082, 1.442695
  %v1084 = vpow.pop %v1083
  %v1085 = vadd.f32 %v1084, 1.0
  %v1086 = vrcp.pop %v1085
  %v1087 = vmul.f32 1.0, %v1086
  %v1088 = vadd.f32 %v1078, %v442
  %1090 = vrot.lane.b32.xlu0 %v1088, 64
  %v1091 = vpop.permute.xlu0 %1090
  %v1093 = vmul.f32 %v1087, %v1091
  %1095 = vrot.lane.b32.xlu0 %v1093, 64
  %v1096 = vpop.permute.xlu0 %1095
  %v1098 = vadd.f32 %v1008, %v1096
  %v1099 = vtanh.pop %v1098
  %v1100 = vsub.f32 1.0, %v1087
  %1102 = vrot.lane.b32.xlu0 %v1099, 96
  %v1103 = vpop.permute.xlu0 %1102
  %v1105 = vmul.f32 %v1100, %v1103
  %v1106 = vmul.f32 %v1087, %v1000
  %v1107 = vadd.f32 %v1105, %v1106
  %1109 = vrot.lane.b32.xlu0 %v1107, 96
  %v1110 = vpop.permute.xlu0 %1109
  %s1112 = scalar_lea.vmem [#allocation3], 48
  %1113 = vst.msk [vmem:[%s1112] sm:$0xff] %vm210, %v1110
  %s1114 = scalar_lea.vmem [#allocation2], 56
  %v1115 = vld [vmem:[%s1114] sm:$0xff]
  %v1116 = vsel %vm210, %v1110, 0
  %1118 = vmatprep.subr.mxu0 0.0
  %1119 = vmatpush1.msra.mxu0 %v349
  %1120 = vmatprep.subr.mxu0 0.0
  %1121 = vmatpush1.msra.mxu0 %v350
  %1122 = vmatprep.subr.mxu0 0.0
  %1123 = vmatpush1.msra.mxu0 %v351
  %1124 = vmatprep.subr.mxu0 0.0
  %1125 = vmatpush1.msra.mxu0 %v352
  %1126 = vmatprep.subr.mxu0 0.0
  %1127 = vmatpush1.msra.mxu0 0.0
  %1128 = vmatprep.subr.mxu0 0.0
  %1129 = vmatpush1.msra.mxu0 0.0
  %1130 = vmatprep.subr.mxu0 0.0
  %1131 = vmatpush1.msra.mxu0 0.0
  %1132 = vmatprep.subr.mxu0 0.0
  %1133 = vmatpush1.msra.mxu0 0.0
  %1134 = vmatprep.subr.mxu0 0.0
  %1135 = vmatpush1.msra.mxu0 0.0
  %1136 = vmatprep.subr.mxu0 0.0
  %1137 = vmatpush1.msra.mxu0 0.0
  %1138 = vmatprep.subr.mxu0 0.0
  %1139 = vmatpush1.msra.mxu0 0.0
  %1140 = vmatprep.subr.mxu0 0.0
  %1141 = vmatpush1.msra.mxu0 0.0
  %1142 = vmatprep.subr.mxu0 0.0
  %1143 = vmatpush1.msra.mxu0 0.0
  %1144 = vmatprep.subr.mxu0 0.0
  %1145 = vmatpush1.msra.mxu0 0.0
  %1146 = vmatprep.subr.mxu0 0.0
  %1147 = vmatpush1.msra.mxu0 0.0
  %1148 = vmatprep.subr.mxu0 0.0
  %1149 = vmatpush1.msra.mxu0 0.0
  %1150 = vmatprep.subr.mxu0 0.0
  %1151 = vmatpush1.msra.mxu0 0.0
  %1152 = vmatprep.subr.mxu0 0.0
  %1153 = vmatpush1.msra.mxu0 0.0
  %1154 = vmatprep.subr.mxu0 0.0
  %1155 = vmatpush1.msra.mxu0 0.0
  %1156 = vmatprep.subr.mxu0 0.0
  %1157 = vmatpush1.msra.mxu0 0.0
  %1158 = vmatprep.subr.mxu0 0.0
  %1159 = vmatpush1.msra.mxu0 0.0
  %1160 = vmatprep.subr.mxu0 0.0
  %1161 = vmatpush1.msra.mxu0 0.0
  %1162 = vmatprep.subr.mxu0 0.0
  %1163 = vmatpush1.msra.mxu0 0.0
  %1164 = vmatprep.subr.mxu0 0.0
  %1165 = vmatpush1.msra.mxu0 0.0
  %1166 = vmatprep.subr.mxu0 0.0
  %1167 = vmatpush1.msra.mxu0 0.0
  %1168 = vmatprep.subr.mxu0 0.0
  %1169 = vmatpush1.msra.mxu0 0.0
  %1170 = vmatprep.subr.mxu0 0.0
  %1171 = vmatpush1.msra.mxu0 0.0
  %1172 = vmatprep.subr.mxu0 0.0
  %1173 = vmatpush1.msra.mxu0 0.0
  %1174 = vmatprep.subr.mxu0 0.0
  %1175 = vmatpush1.msra.mxu0 0.0
  %1176 = vmatprep.subr.mxu0 0.0
  %1177 = vmatpush1.msra.mxu0 0.0
  %1178 = vmatprep.subr.mxu0 0.0
  %1179 = vmatpush1.msra.mxu0 0.0
  %1180 = vmatprep.subr.mxu0 0.0
  %1181 = vmatpush1.msra.mxu0 0.0
  %1182 = vmatprep.mubr.f32.mxu0 0.0
  %1183 = vmatmul.mubr.f32.gmra.mrb[0].mxu0 %v1116
  %v1184 = vpop.f32.mrb[0].mxu0
  %v1185 = vadd.f32 0.0, %v1184
  %v1186 = vpop.f32.mrb[0].mxu0
  %1187 = vdwg.mxu0
  %v1188 = vadd.f32 %v1115, %v1185
  %v1189 = vxor.u32 %v1188, 2147483648
  %v1190 = vmul.f32 %v1189, 1.442695
  %v1191 = vpow.pop %v1190
  %v1192 = vadd.f32 %v1191, 1.0
  %v1193 = vrcp.pop %v1192
  %v1194 = vmul.f32 1.0, %v1193
  %v1195 = vadd.f32 %v1185, %v442
  %1197 = vrot.lane.b32.xlu0 %v1195, 64
  %v1198 = vpop.permute.xlu0 %1197
  %v1200 = vmul.f32 %v1194, %v1198
  %1202 = vrot.lane.b32.xlu0 %v1200, 64
  %v1203 = vpop.permute.xlu0 %1202
  %v1205 = vadd.f32 %v1115, %v1203
  %v1206 = vtanh.pop %v1205
  %v1207 = vsub.f32 1.0, %v1194
  %1209 = vrot.lane.b32.xlu0 %v1206, 96
  %v1210 = vpop.permute.xlu0 %1209
  %v1212 = vmul.f32 %v1207, %v1210
  %v1213 = vmul.f32 %v1194, %v1107
  %v1214 = vadd.f32 %v1212, %v1213
  %1216 = vrot.lane.b32.xlu0 %v1214, 96
  %v1217 = vpop.permute.xlu0 %1216
  %s1219 = scalar_lea.vmem [#allocation3], 56
  %1220 = vst.msk [vmem:[%s1219] sm:$0xff] %vm210, %v1217
  %1221 = vst.msk [vmem:[%s14] sm:$0xff] %vm210, %v1217
  %v1222 = vld [vmem:[#allocation3] sm:$0xff]
  %v1223 = vld [vmem:[#allocation3 + $0x8] sm:$0xff]
  %v1224 = vld [vmem:[#allocation3 + $0x10] sm:$0xff]
  %v1225 = vld [vmem:[#allocation3 + $0x18] sm:$0xff]
  %v1226 = vld [vmem:[#allocation3 + $0x20] sm:$0xff]
  %v1227 = vld [vmem:[#allocation3 + $0x28] sm:$0xff]
  %v1228 = vld [vmem:[#allocation3 + $0x30] sm:$0xff]
  %v1229 = vld [vmem:[#allocation3 + $0x38] sm:$0xff]
  %v1230 = vld [vmem:[%s7] sm:$0xff]
  %v1231 = vld [vmem:[%s7 + $0x8] sm:$0xff]
  %v1232 = vld [vmem:[%s7 + $0x10] sm:$0xff]
  %v1233 = vld [vmem:[%s7 + $0x18] sm:$0xff]
  %v1234 = vld [vmem:[%s8] sm:$0x1]
  %v1236 = vlaneseq
  %v1237 = vshrl.u32 %v1236, 7
  %v1238 = vsub.s32 0, %v1237
  %v1239 = vrot.slane %v1234, %v1238
  %v1242 = vsel %vm210, %v1222, 0
  %v1245 = vsel %vm210, %v1223, 0
  %v1248 = vsel %vm210, %v1224, 0
  %v1251 = vsel %vm210, %v1225, 0
  %v1254 = vsel %vm210, %v1226, 0
  %v1257 = vsel %vm210, %v1227, 0
  %v1260 = vsel %vm210, %v1228, 0
  %v1263 = vsel %vm210, %v1229, 0
  %1265 = vmatprep.subr.mxu0 0.0
  %1266 = vmatpush1.msra.mxu0 %v1230
  %1267 = vmatprep.subr.mxu0 0.0
  %1268 = vmatpush1.msra.mxu0 %v1231
  %1269 = vmatprep.subr.mxu0 0.0
  %1270 = vmatpush1.msra.mxu0 %v1232
  %1271 = vmatprep.subr.mxu0 0.0
  %1272 = vmatpush1.msra.mxu0 %v1233
  %1273 = vmatprep.subr.mxu0 0.0
  %1274 = vmatpush1.msra.mxu0 0.0
  %1275 = vmatprep.subr.mxu0 0.0
  %1276 = vmatpush1.msra.mxu0 0.0
  %1277 = vmatprep.subr.mxu0 0.0
  %1278 = vmatpush1.msra.mxu0 0.0
  %1279 = vmatprep.subr.mxu0 0.0
  %1280 = vmatpush1.msra.mxu0 0.0
  %1281 = vmatprep.subr.mxu0 0.0
  %1282 = vmatpush1.msra.mxu0 0.0
  %1283 = vmatprep.subr.mxu0 0.0
  %1284 = vmatpush1.msra.mxu0 0.0
  %1285 = vmatprep.subr.mxu0 0.0
  %1286 = vmatpush1.msra.mxu0 0.0
  %1287 = vmatprep.subr.mxu0 0.0
  %1288 = vmatpush1.msra.mxu0 0.0
  %1289 = vmatprep.subr.mxu0 0.0
  %1290 = vmatpush1.msra.mxu0 0.0
  %1291 = vmatprep.subr.mxu0 0.0
  %1292 = vmatpush1.msra.mxu0 0.0
  %1293 = vmatprep.subr.mxu0 0.0
  %1294 = vmatpush1.msra.mxu0 0.0
  %1295 = vmatprep.subr.mxu0 0.0
  %1296 = vmatpush1.msra.mxu0 0.0
  %1297 = vmatprep.subr.mxu0 0.0
  %1298 = vmatpush1.msra.mxu0 0.0
  %1299 = vmatprep.subr.mxu0 0.0
  %1300 = vmatpush1.msra.mxu0 0.0
  %1301 = vmatprep.subr.mxu0 0.0
  %1302 = vmatpush1.msra.mxu0 0.0
  %1303 = vmatprep.subr.mxu0 0.0
  %1304 = vmatpush1.msra.mxu0 0.0
  %1305 = vmatprep.subr.mxu0 0.0
  %1306 = vmatpush1.msra.mxu0 0.0
  %1307 = vmatprep.subr.mxu0 0.0
  %1308 = vmatpush1.msra.mxu0 0.0
  %1309 = vmatprep.subr.mxu0 0.0
  %1310 = vmatpush1.msra.mxu0 0.0
  %1311 = vmatprep.subr.mxu0 0.0
  %1312 = vmatpush1.msra.mxu0 0.0
  %1313 = vmatprep.subr.mxu0 0.0
  %1314 = vmatpush1.msra.mxu0 0.0
  %1315 = vmatprep.subr.mxu0 0.0
  %1316 = vmatpush1.msra.mxu0 0.0
  %1317 = vmatprep.subr.mxu0 0.0
  %1318 = vmatpush1.msra.mxu0 0.0
  %1319 = vmatprep.subr.mxu0 0.0
  %1320 = vmatpush1.msra.mxu0 0.0
  %1321 = vmatprep.subr.mxu0 0.0
  %1322 = vmatpush1.msra.mxu0 0.0
  %1323 = vmatprep.subr.mxu0 0.0
  %1324 = vmatpush1.msra.mxu0 0.0
  %1325 = vmatprep.subr.mxu0 0.0
  %1326 = vmatpush1.msra.mxu0 0.0
  %1327 = vmatprep.subr.mxu0 0.0
  %1328 = vmatpush1.msra.mxu0 0.0
  %1329 = vmatprep.mubr.f32.mxu0 0.0
  %1330 = vmatmul.mubr.f32.gmra.mrb[0].mxu0 %v1242
  %v1331 = vpop.f32.mrb[0].mxu0
  %v1332 = vadd.f32 %v1239, %v1331
  %v1333 = vpop.f32.mrb[0].mxu0
  %1334 = vmatprep.mubr.f32.mxu0 0.0
  %1335 = vmatmul.mubr.f32.gmra.mrb[0].mxu0 %v1245
  %v1336 = vpop.f32.mrb[0].mxu0
  %v1337 = vadd.f32 %v1239, %v1336
  %v1338 = vpop.f32.mrb[0].mxu0
  %1339 = vmatprep.mubr.f32.mxu0 0.0
  %1340 = vmatmul.mubr.f32.gmra.mrb[0].mxu0 %v1248
  %v1341 = vpop.f32.mrb[0].mxu0
  %v1342 = vadd.f32 %v1239, %v1341
  %v1343 = vpop.f32.mrb[0].mxu0
  %1344 = vmatprep.mubr.f32.mxu0 0.0
  %1345 = vmatmul.mubr.f32.gmra.mrb[0].mxu0 %v1251
  %v1346 = vpop.f32.mrb[0].mxu0
  %v1347 = vadd.f32 %v1239, %v1346
  %v1348 = vpop.f32.mrb[0].mxu0
  %1349 = vmatprep.mubr.f32.mxu0 0.0
  %1350 = vmatmul.mubr.f32.gmra.mrb[0].mxu0 %v1254
  %v1351 = vpop.f32.mrb[0].mxu0
  %v1352 = vadd.f32 %v1239, %v1351
  %v1353 = vpop.f32.mrb[0].mxu0
  %1354 = vmatprep.mubr.f32.mxu0 0.0
  %1355 = vmatmul.mubr.f32.gmra.mrb[0].mxu0 %v1257
  %v1356 = vpop.f32.mrb[0].mxu0
  %v1357 = vadd.f32 %v1239, %v1356
  %v1358 = vpop.f32.mrb[0].mxu0
  %1359 = vmatprep.mubr.f32.mxu0 0.0
  %1360 = vmatmul.mubr.f32.gmra.mrb[0].mxu0 %v1260
  %v1361 = vpop.f32.mrb[0].mxu0
  %v1362 = vadd.f32 %v1239, %v1361
  %v1363 = vpop.f32.mrb[0].mxu0
  %1364 = vmatprep.mubr.f32.mxu0 0.0
  %1365 = vmatmul.mubr.f32.gmra.mrb[0].mxu0 %v1263
  %v1366 = vpop.f32.mrb[0].mxu0
  %v1367 = vadd.f32 %v1239, %v1366
  %v1368 = vpop.f32.mrb[0].mxu0
  %1369 = vdwg.mxu0
  %v1370 = vmax.f32 %v1332, 0.0
  %v1371 = vmax.f32 %v1337, 0.0
  %v1372 = vmax.f32 %v1342, 0.0
  %v1373 = vmax.f32 %v1347, 0.0
  %v1374 = vmax.f32 %v1352, 0.0
  %v1375 = vmax.f32 %v1357, 0.0
  %v1376 = vmax.f32 %v1362, 0.0
  %v1377 = vmax.f32 %v1367, 0.0
  %1378 = vst.msk [vmem:[%s13] sm:$0xff] %vm210, %v1370
  %1379 = vst.msk [vmem:[%s13 + $0x8] sm:$0xff] %vm210, %v1371
  %1380 = vst.msk [vmem:[%s13 + $0x10] sm:$0xff] %vm210, %v1372
  %1381 = vst.msk [vmem:[%s13 + $0x18] sm:$0xff] %vm210, %v1373
  %1382 = vst.msk [vmem:[%s13 + $0x20] sm:$0xff] %vm210, %v1374
  %1383 = vst.msk [vmem:[%s13 + $0x28] sm:$0xff] %vm210, %v1375
  %1384 = vst.msk [vmem:[%s13 + $0x30] sm:$0xff] %vm210, %v1376
  %1385 = vst.msk [vmem:[%s13 + $0x38] sm:$0xff] %vm210, %v1377
  %v1386 = vld [vmem:[%s9] sm:$0xff]
  %v1387 = vld [vmem:[%s9 + $0x8] sm:$0xff]
  %v1388 = vld [vmem:[%s9 + $0x10] sm:$0xff]
  %v1389 = vld [vmem:[%s9 + $0x18] sm:$0xff]
  %v1390 = vld [vmem:[%s10] sm:$0x1]
  %v1392 = vlaneseq
  %v1393 = vshrl.u32 %v1392, 7
  %v1394 = vsub.s32 0, %v1393
  %v1395 = vrot.slane %v1390, %v1394
  %v1398 = vsel %vm210, %v1370, 0
  %v1401 = vsel %vm210, %v1371, 0
  %v1404 = vsel %vm210, %v1372, 0
  %v1407 = vsel %vm210, %v1373, 0
  %v1410 = vsel %vm210, %v1374, 0
  %v1413 = vsel %vm210, %v1375, 0
  %v1416 = vsel %vm210, %v1376, 0
  %v1419 = vsel %vm210, %v1377, 0
  %1421 = vmatprep.subr.mxu0 0.0
  %1422 = vmatpush1.msra.mxu0 %v1386
  %1423 = vmatprep.subr.mxu0 0.0
  %1424 = vmatpush1.msra.mxu0 %v1387
  %1425 = vmatprep.subr.mxu0 0.0
  %1426 = vmatpush1.msra.mxu0 %v1388
  %1427 = vmatprep.subr.mxu0 0.0
  %1428 = vmatpush1.msra.mxu0 %v1389
  %1429 = vmatprep.subr.mxu0 0.0
  %1430 = vmatpush1.msra.mxu0 0.0
  %1431 = vmatprep.subr.mxu0 0.0
  %1432 = vmatpush1.msra.mxu0 0.0
  %1433 = vmatprep.subr.mxu0 0.0
  %1434 = vmatpush1.msra.mxu0 0.0
  %1435 = vmatprep.subr.mxu0 0.0
  %1436 = vmatpush1.msra.mxu0 0.0
  %1437 = vmatprep.subr.mxu0 0.0
  %1438 = vmatpush1.msra.mxu0 0.0
  %1439 = vmatprep.subr.mxu0 0.0
  %1440 = vmatpush1.msra.mxu0 0.0
  %1441 = vmatprep.subr.mxu0 0.0
  %1442 = vmatpush1.msra.mxu0 0.0
  %1443 = vmatprep.subr.mxu0 0.0
  %1444 = vmatpush1.msra.mxu0 0.0
  %1445 = vmatprep.subr.mxu0 0.0
  %1446 = vmatpush1.msra.mxu0 0.0
  %1447 = vmatprep.subr.mxu0 0.0
  %1448 = vmatpush1.msra.mxu0 0.0
  %1449 = vmatprep.subr.mxu0 0.0
  %1450 = vmatpush1.msra.mxu0 0.0
  %1451 = vmatprep.subr.mxu0 0.0
  %1452 = vmatpush1.msra.mxu0 0.0
  %1453 = vmatprep.subr.mxu0 0.0
  %1454 = vmatpush1.msra.mxu0 0.0
  %1455 = vmatprep.subr.mxu0 0.0
  %1456 = vmatpush1.msra.mxu0 0.0
  %1457 = vmatprep.subr.mxu0 0.0
  %1458 = vmatpush1.msra.mxu0 0.0
  %1459 = vmatprep.subr.mxu0 0.0
  %1460 = vmatpush1.msra.mxu0 0.0
  %1461 = vmatprep.subr.mxu0 0.0
  %1462 = vmatpush1.msra.mxu0 0.0
  %1463 = vmatprep.subr.mxu0 0.0
  %1464 = vmatpush1.msra.mxu0 0.0
  %1465 = vmatprep.subr.mxu0 0.0
  %1466 = vmatpush1.msra.mxu0 0.0
  %1467 = vmatprep.subr.mxu0 0.0
  %1468 = vmatpush1.msra.mxu0 0.0
  %1469 = vmatprep.subr.mxu0 0.0
  %1470 = vmatpush1.msra.mxu0 0.0
  %1471 = vmatprep.subr.mxu0 0.0
  %1472 = vmatpush1.msra.mxu0 0.0
  %1473 = vmatprep.subr.mxu0 0.0
  %1474 = vmatpush1.msra.mxu0 0.0
  %1475 = vmatprep.subr.mxu0 0.0
  %1476 = vmatpush1.msra.mxu0 0.0
  %1477 = vmatprep.subr.mxu0 0.0
  %1478 = vmatpush1.msra.mxu0 0.0
  %1479 = vmatprep.subr.mxu0 0.0
  %1480 = vmatpush1.msra.mxu0 0.0
  %1481 = vmatprep.subr.mxu0 0.0
  %1482 = vmatpush1.msra.mxu0 0.0
  %1483 = vmatprep.subr.mxu0 0.0
  %1484 = vmatpush1.msra.mxu0 0.0
  %1485 = vmatprep.mubr.f32.mxu0 0.0
  %1486 = vmatmul.mubr.f32.gmra.mrb[0].mxu0 %v1398
  %v1487 = vpop.f32.mrb[0].mxu0
  %v1488 = vadd.f32 %v1395, %v1487
  %v1489 = vpop.f32.mrb[0].mxu0
  %1490 = vmatprep.mubr.f32.mxu0 0.0
  %1491 = vmatmul.mubr.f32.gmra.mrb[0].mxu0 %v1401
  %v1492 = vpop.f32.mrb[0].mxu0
  %v1493 = vadd.f32 %v1395, %v1492
  %v1494 = vpop.f32.mrb[0].mxu0
  %1495 = vmatprep.mubr.f32.mxu0 0.0
  %1496 = vmatmul.mubr.f32.gmra.mrb[0].mxu0 %v1404
  %v1497 = vpop.f32.mrb[0].mxu0
  %v1498 = vadd.f32 %v1395, %v1497
  %v1499 = vpop.f32.mrb[0].mxu0
  %1500 = vmatprep.mubr.f32.mxu0 0.0
  %1501 = vmatmul.mubr.f32.gmra.mrb[0].mxu0 %v1407
  %v1502 = vpop.f32.mrb[0].mxu0
  %v1503 = vadd.f32 %v1395, %v1502
  %v1504 = vpop.f32.mrb[0].mxu0
  %1505 = vmatprep.mubr.f32.mxu0 0.0
  %1506 = vmatmul.mubr.f32.gmra.mrb[0].mxu0 %v1410
  %v1507 = vpop.f32.mrb[0].mxu0
  %v1508 = vadd.f32 %v1395, %v1507
  %v1509 = vpop.f32.mrb[0].mxu0
  %1510 = vmatprep.mubr.f32.mxu0 0.0
  %1511 = vmatmul.mubr.f32.gmra.mrb[0].mxu0 %v1413
  %v1512 = vpop.f32.mrb[0].mxu0
  %v1513 = vadd.f32 %v1395, %v1512
  %v1514 = vpop.f32.mrb[0].mxu0
  %1515 = vmatprep.mubr.f32.mxu0 0.0
  %1516 = vmatmul.mubr.f32.gmra.mrb[0].mxu0 %v1416
  %v1517 = vpop.f32.mrb[0].mxu0
  %v1518 = vadd.f32 %v1395, %v1517
  %v1519 = vpop.f32.mrb[0].mxu0
  %1520 = vmatprep.mubr.f32.mxu0 0.0
  %1521 = vmatmul.mubr.f32.gmra.mrb[0].mxu0 %v1419
  %v1522 = vpop.f32.mrb[0].mxu0
  %v1523 = vadd.f32 %v1395, %v1522
  %v1524 = vpop.f32.mrb[0].mxu0
  %1525 = vdwg.mxu0
  %vm1526 = vcmask 64512
  %1527 = vst.msk [vmem:[%s12] sm:$0xff] %vm1526, %v1488
  %1528 = vst.msk [vmem:[%s12 + $0x8] sm:$0xff] %vm1526, %v1493
  %1529 = vst.msk [vmem:[%s12 + $0x10] sm:$0xff] %vm1526, %v1498
  %1530 = vst.msk [vmem:[%s12 + $0x18] sm:$0xff] %vm1526, %v1503
  %1531 = vst.msk [vmem:[%s12 + $0x20] sm:$0xff] %vm1526, %v1508
  %1532 = vst.msk [vmem:[%s12 + $0x28] sm:$0xff] %vm1526, %v1513
  %1533 = vst.msk [vmem:[%s12 + $0x30] sm:$0xff] %vm1526, %v1518
  %1534 = vst.msk [vmem:[%s12 + $0x38] sm:$0xff] %vm1526, %v1523
  // Predicated region
  $region50: #{rnn_forward.1} parent=0 // pred_check
    _
  $region51: #{rnn_forward.1} parent=0 // pred_check_branch
    %1536 = sbr.rel (0) target = $region53
  $region52: #{rnn_forward.1} parent=0 // pred_region
    _
  $region53: #{rnn_forward.1} parent=0 // pred_fallthru
    _
  // Predicated region
  $region54: #{rnn_forward.1} parent=0 // pred_check
    _
  $region55: #{rnn_forward.1} parent=0 // pred_check_branch
    %1538 = sbr.rel (0) target = $region57
  $region56: #{rnn_forward.1} parent=0 // pred_region
    _
  $region57: #{rnn_forward.1} parent=0 // pred_fallthru
    _
  // Predicated region
  $region58: #{rnn_forward.1} parent=0 // pred_check
    _
  $region59: #{rnn_forward.1} parent=0 // pred_check_branch
    %1540 = sbr.rel (0) target = $region61
  $region60: #{rnn_forward.1} parent=0 // pred_region
    _
  $region61: #{rnn_forward.1} parent=0 // pred_fallthru
    _
  // Predicated region
  $region62: #{rnn_forward.1} parent=0 // pred_check
    _
  $region63: #{rnn_forward.1} parent=0 // pred_check_branch
    %1542 = sbr.rel (0) target = $region65
  $region64: #{rnn_forward.1} parent=0 // pred_region
    _
  $region65: #{rnn_forward.1} parent=0 // pred_fallthru
    _
  // Predicated region
  $region66: #{rnn_forward.1} parent=0 // pred_check
    _
  $region67: #{rnn_forward.1} parent=0 // pred_check_branch
    %1544 = sbr.rel (0) target = $region69
  $region68: #{rnn_forward.1} parent=0 // pred_region
    _
  $region69: #{rnn_forward.1} parent=0 // pred_fallthru
    _
  // Predicated region
  $region70: #{rnn_forward.1} parent=0 // pred_check
    _
  $region71: #{rnn_forward.1} parent=0 // pred_check_branch
    %1546 = sbr.rel (0) target = $region73
  $region72: #{rnn_forward.1} parent=0 // pred_region
    _
  $region73: #{rnn_forward.1} parent=0 // pred_fallthru
    _

</llo_original>
